<compile_context>
chip_gen: v6e
topology: v6e:2x2x1
jax: 0.10.0
libtpu: 0.0.40
codegen_flags: <defaults>
</compile_context>

<pallas_src>
import functools

import numpy as np
import jax
import jax.numpy as jnp
from jax.experimental import pallas as pl
from jax.experimental.pallas import tpu as pltpu


def _round_up(x, m):
    return (x + m - 1) // m * m


def _device_kind():
    try:
        return jax.devices()[0].device_kind.lower()
    except Exception:
        return ""


def _vmem_limit_bytes():
    """Generation-aware scoped-VMEM limit (<=48 MiB on v7x, ~96 MiB v5e/v6e)."""
    cap = None
    try:
        cap = int(pltpu.get_tpu_info().vmem_capacity_bytes)
    except Exception:
        cap = None
    if cap is None:
        kind = _device_kind()
        if "v7" in kind:
            cap = 64 * 2**20
        elif kind:
            cap = 128 * 2**20
        else:
            cap = 64 * 2**20            # unknown: be conservative
    return min(cap * 3 // 4, 100 * 2**20)


def _choose_proj_first(Wp, Sp, H, Vt, nvt, mxu_k):
    """MXU-K-fill weighted cost of merge@(enc@W) vs (merge@enc)@W (+ recast)."""
    def eff(k):
        return min(k, mxu_k) / float(mxu_k)
    Vtot = Vt * nvt
    cost_pf = Sp * H * Vtot / eff(H) + Wp * Sp * Vtot / eff(Sp) + 0.5 * Sp * Vtot
    cost_mf = Wp * Sp * H / eff(Sp) + Wp * H * Vtot / eff(H) + 0.5 * Wp * H
    return cost_pf < cost_mf


def _pick_batch_block(B, Wp, Sp, H, Vt, nvt, out_bytes, budget, max_rows):
    """Largest batch block whose VMEM footprint fits `budget`.

    Counts the resident weight/bias buffers, double-buffered inputs and
    outputs, scratch and in-kernel f32 temporaries.  Keeps >= 2 grid steps on
    the (megacore-sharded) batch axis whenever B > 1, preferring an even
    number of steps so both v7x TensorCores stay busy.
    """
    w_bufs = 1 if nvt == 1 else 2                      # Buffered(1) when constant
    resident = w_bufs * (H * Vt * 2 + Vt * 4)          # bf16 weight tile + f32 bias
    per_bb = (
        2 * (Wp * Sp * 2 + Sp * H * 2 + Wp * 4)        # double-buffered inputs
        + 2 * (Wp * Vt * out_bytes + 2 * Wp * 4)       # double-buffered outputs
        + Wp * H * 2 + 5 * Wp * 4                      # merged scratch + accumulators
        + 3 * Wp * Vt * 4                              # in-kernel f32 temporaries
    )
    max_bb = B if B == 1 else max(1, B // 2)
    feas = [bb for bb in range(1, max_bb + 1)
            if B % bb == 0 and bb * Wp <= max_rows
            and resident + bb * per_bb <= budget]
    if not feas:
        return 1
    even = [bb for bb in feas if (B // bb) % 2 == 0]
    return max(even) if even else max(feas)


def _subword_bert_kernel(m_ref, enc_ref, w_ref, b_ref, tgt_ref,
                         logits_ref, argmax_ref, wloss_ref,
                         merged_ref, m_run, l_run, best_val, best_idx, picked,
                         *, padding_idx, proj_first, use_bf16_exp):
    bb, wp, sp = m_ref.shape
    h = enc_ref.shape[-1]
    vt = w_ref.shape[-1]
    j = pl.program_id(1)
    nvt = pl.num_programs(1)

    @pl.when(j == 0)
    def _init():
        m_run[...] = jnp.full(m_run.shape, -jnp.inf, jnp.float32)
        l_run[...] = jnp.zeros(l_run.shape, jnp.float32)
        best_val[...] = jnp.full(best_val.shape, -jnp.inf, jnp.float32)
        best_idx[...] = jnp.zeros(best_idx.shape, jnp.int32)
        picked[...] = jnp.zeros(picked.shape, jnp.float32)
        if not proj_first:
            # merged word encodings are V-tile invariant: compute once per batch
            # block and cache in VMEM scratch (dropout == identity in eval).
            merged = jnp.einsum('bws,bsh->bwh', m_ref[...], enc_ref[...],
                                preferred_element_type=jnp.float32)
            merged_ref[...] = merged.astype(jnp.bfloat16)

    w_tile = w_ref[...]                      # (h, vt)  bf16
    bias = b_ref[...].reshape(1, 1, vt)      # f32 (-1e30 on padded classes)

    if proj_first:
        # logits = merge @ (enc @ W_tile) -- fewer weighted FLOPs when H is large
        proj = jnp.dot(enc_ref[...].reshape(bb * sp, h), w_tile,
                       preferred_element_type=jnp.float32)
        proj = proj.reshape(bb, sp, vt).astype(jnp.bfloat16)
        logits = jnp.einsum('bws,bsv->bwv', m_ref[...], proj,
                            preferred_element_type=jnp.float32)
    else:
        # logits = (merge @ enc) @ W_tile (merged cached in scratch)
        merged = merged_ref[...].reshape(bb * wp, h)
        logits = jnp.dot(merged, w_tile,
                         preferred_element_type=jnp.float32).reshape(bb, wp, vt)
    logits = logits + bias

    out_tile = logits.astype(logits_ref.dtype)
    logits_ref[...] = out_tile

    # running argmax over the *emitted* (rounded) logits; first-occurrence ties.
    cmp = logits if out_tile.dtype == jnp.float32 else out_tile.astype(jnp.float32)
    col = jax.lax.broadcasted_iota(jnp.int32, (1, 1, vt), 2)   # small, broadcast only
    t_max = jnp.max(cmp, axis=-1, keepdims=True)
    t_idx = jnp.min(jnp.where(cmp == t_max, col, vt),
                    axis=-1, keepdims=True) + j * vt
    better = t_max > best_val[...]
    best_idx[...] = jnp.where(better, t_idx, best_idx[...])
    best_val[...] = jnp.where(better, t_max, best_val[...])

    # online logsumexp (f32 running stats; bf16 exp where the EUP supports it).
    m_new = jnp.maximum(m_run[...], jnp.max(logits, axis=-1, keepdims=True))
    shifted = logits - m_new
    if use_bf16_exp:
        p = jnp.exp(shifted.astype(jnp.bfloat16)).astype(jnp.float32)
    else:
        p = jnp.exp(shifted)
    l_run[...] = (l_run[...] * jnp.exp(m_run[...] - m_new)
                  + jnp.sum(p, axis=-1, keepdims=True))
    m_run[...] = m_new

    # gather the target-class logit falling inside this V tile.
    tgt = tgt_ref[...]                                          # (bb, wp, 1) int32
    gcol = col + j * vt
    picked[...] += jnp.sum(jnp.where(gcol == tgt, logits, 0.0),
                           axis=-1, keepdims=True)

    @pl.when(j == nvt - 1)
    def _finalize():
        valid = (tgt_ref[...] != padding_idx).astype(jnp.float32)
        wloss_ref[...] = (m_run[...] + jnp.log(l_run[...]) - picked[...]) * valid
        argmax_ref[...] = best_idx[...]


def subword_bert_forward(merge_mat, bert_encodings, dense_w, dense_b, targets,
                         padding_idx, *, max_rows_per_step=256, proj_first=None,
                         logits_dtype=jnp.bfloat16, force_num_v_tiles=None):
    """Returns (logits [B,W,V], topk_inds [B,W] (topk=1), mean CE loss scalar)."""
    B, W, S = merge_mat.shape
    H = bert_encodings.shape[-1]
    V = dense_w.shape[-1]

    kind = _device_kind()
    vmem_limit = _vmem_limit_bytes()
    budget = int(vmem_limit * 0.85)
    mxu_k = 128 if "v5" in kind else 256
    use_bf16_exp = ("v6" in kind) or ("v7" in kind)   # v5e EUP has no bf16

    Wp = _round_up(W, 16)                              # bf16 sublane tiling
    Sp = _round_up(S, 128) if S >= 64 else _round_up(S, 16)
    out_bytes = jnp.dtype(logits_dtype).itemsize

    # ---- V tiling: weight tile must fit the budget (mandatory on v7x) ----
    Vp0 = _round_up(V, 128)
    if force_num_v_tiles is not None:
        Vt = 128
        Vp = Vt * int(force_num_v_tiles)
        assert Vp >= V
    else:
        vt_cap = max(128, (int(budget * 0.4) // (2 * H * 2)) // 128 * 128)
        Vt = min(Vp0, vt_cap, 8192)
        Vp = _round_up(Vp0, Vt)
    nvt = Vp // Vt

    Bb = _pick_batch_block(B, Wp, Sp, H, Vt, nvt, out_bytes, budget,
                           max_rows_per_step)
    nblk = B // Bb

    if proj_first is None:
        proj_first = _choose_proj_first(Wp, Sp, H, Vt, nvt, mxu_k)

    # bf16 MXU operands; padded merge rows / enc rows / weight columns are zero.
    merge_p = jnp.zeros((B, Wp, Sp), jnp.bfloat16).at[:, :W, :S].set(
        merge_mat.astype(jnp.bfloat16))
    enc_p = jnp.zeros((B, Sp, H), jnp.bfloat16).at[:, :S, :].set(
        bert_encodings.astype(jnp.bfloat16))
    w_p = jnp.zeros((H, Vp), jnp.bfloat16).at[:, :V].set(
        dense_w.astype(jnp.bfloat16))
    # padded classes get a hugely negative bias: never win argmax, exp() -> 0.
    b_p = jnp.full((1, Vp), -1e30, jnp.float32).at[0, :V].set(
        dense_b.astype(jnp.float32))
    tgt_p = jnp.full((B, Wp, 1), padding_idx, jnp.int32).at[:, :W, 0].set(
        targets.astype(jnp.int32))

    kernel = functools.partial(_subword_bert_kernel, padding_idx=padding_idx,
                               proj_first=proj_first, use_bf16_exp=use_bf16_exp)

    # weight/bias are grid-constant when there is a single V tile: one buffer.
    buffered = getattr(pl, "Buffered", None)
    w_pm = buffered(1) if (nvt == 1 and buffered is not None) else None

    def _spec(shape, imap, pm=None):
        if pm is None:
            return pl.BlockSpec(shape, imap)
        try:
            return pl.BlockSpec(shape, imap, pipeline_mode=pm)
        except TypeError:                      # older BlockSpec signature
            return pl.BlockSpec(shape, imap)

    logits_p, amax_p, wloss = pl.pallas_call(
        kernel,
        out_shape=(
            jax.ShapeDtypeStruct((B, Wp, Vp), logits_dtype),
            jax.ShapeDtypeStruct((B, Wp, 1), jnp.int32),
            jax.ShapeDtypeStruct((B, Wp, 1), jnp.float32),
        ),
        grid_spec=pltpu.PrefetchScalarGridSpec(
            num_scalar_prefetch=0,
            grid=(nblk, nvt),
            in_specs=[
                pl.BlockSpec((Bb, Wp, Sp), lambda i, j: (i, 0, 0)),   # merge matrix
                pl.BlockSpec((Bb, Sp, H), lambda i, j: (i, 0, 0)),    # bert encodings
                _spec((H, Vt), lambda i, j: (0, j), w_pm),            # dense weight tile
                _spec((1, Vt), lambda i, j: (0, j), w_pm),            # dense bias tile
                pl.BlockSpec((Bb, Wp, 1), lambda i, j: (i, 0, 0)),    # targets
            ],
            out_specs=[
                pl.BlockSpec((Bb, Wp, Vt), lambda i, j: (i, 0, j)),   # logits (lane-dense)
                pl.BlockSpec((Bb, Wp, 1), lambda i, j: (i, 0, 0)),    # argmax inds
                pl.BlockSpec((Bb, Wp, 1), lambda i, j: (i, 0, 0)),    # per-word CE terms
            ],
            scratch_shapes=[
                pltpu.VMEM((Bb, Wp, H), jnp.bfloat16),   # merged word encodings
                pltpu.VMEM((Bb, Wp, 1), jnp.float32),    # running max (LSE)
                pltpu.VMEM((Bb, Wp, 1), jnp.float32),    # running sum-exp
                pltpu.VMEM((Bb, Wp, 1), jnp.float32),    # running best value
                pltpu.VMEM((Bb, Wp, 1), jnp.int32),      # running best index
                pltpu.VMEM((Bb, Wp, 1), jnp.float32),    # picked target logit
            ],
        ),
        compiler_params=pltpu.CompilerParams(
            dimension_semantics=("parallel", "arbitrary"),
            vmem_limit_bytes=vmem_limit,
        ),
    )(merge_p, enc_p, w_p, b_p, tgt_p)

    logits = logits_p[:, :W, :V]
    topk_inds = amax_p[:, :W, 0]
    # mean CE over non-ignored targets.
    # NOTE: divides by zero if every target == padding_idx (reference does too).
    n_valid = jnp.sum(targets != padding_idx).astype(jnp.float32)
    loss = jnp.sum(wloss) / n_valid
    return logits, topk_inds, loss


def build_merge_matrix(batch_splits, B, W, S):
    """M[b, w, s] = 1/len(word w) if subword s (skipping [CLS]) belongs to word w."""
    m = np.zeros((B, W, S), dtype=np.float32)
    for b, splits in enumerate(batch_splits):
        off = 1  # skip [CLS]
        for wi, n in enumerate(splits):
            m[b, wi, off:off + n] = 1.0 / float(n)
            off += n
    return jnp.asarray(m)


if __name__ == "__main__":
    key = jax.random.PRNGKey(0)
    B, S, H, V = 4, 16, 32, 10          # batch, bert seq len, bert hidden, output_dim
    padding_idx = 0
    batch_splits = [[2, 3, 1, 2], [1, 2, 2], [3, 3], [1, 1, 1, 2]]
    W = max(len(s) for s in batch_splits)

    k_enc, k_w, k_b, k_t = jax.random.split(key, 4)
    bert_encodings = jax.random.normal(k_enc, (B, S, H), jnp.float32)  # stands in for BERT output
    dense_w = 0.1 * jax.random.normal(k_w, (H, V), jnp.float32)        # Linear.weight.T
    dense_b = 0.1 * jax.random.normal(k_b, (V,), jnp.float32)          # Linear.bias

    merge_mat = build_merge_matrix(batch_splits, B, W, S)

    # targets: valid class ids in [1, V); padded word slots get padding_idx (ignored)
    word_valid = np.zeros((B, W), dtype=bool)
    for b, splits in enumerate(batch_splits):
        word_valid[b, :len(splits)] = True
    targets = np.asarray(jax.random.randint(k_t, (B, W), 1, V), dtype=np.int32)
    targets = jnp.asarray(np.where(word_valid, targets, padding_idx).astype(np.int32))

    # run 1: default association (merged-first at these shapes), small rows/step.
    r1 = subword_bert_forward(merge_mat, bert_encodings, dense_w, dense_b,
                              targets, padding_idx, max_rows_per_step=32)
    jax.block_until_ready(r1)
    # run 2: the reassociated merge@(enc@W) path.
    r2 = subword_bert_forward(merge_mat, bert_encodings, dense_w, dense_b,
                              targets, padding_idx, proj_first=True)
    jax.block_until_ready(r2)
    # run 3: forced 2 V tiles to exercise the online-softmax / running-argmax path.
    r3 = subword_bert_forward(merge_mat, bert_encodings, dense_w, dense_b,
                              targets, padding_idx, force_num_v_tiles=2)
    jax.block_until_ready(r3)

    # pure-JAX f32 reference (kernel uses bf16 MXU operands/outputs -> loose tol)
    merged_ref = jnp.einsum("bws,bsh->bwh", merge_mat, bert_encodings)
    logits_ref = merged_ref @ dense_w + dense_b
    valid = (targets != padding_idx)
    lse = jax.nn.logsumexp(logits_ref, axis=-1)
    picked = jnp.take_along_axis(logits_ref, targets[..., None], axis=-1)[..., 0]
    loss_ref = jnp.sum(jnp.where(valid, lse - picked, 0.0)) / jnp.sum(valid)
    logits_ref_np = np.asarray(logits_ref, dtype=np.float32)

    for lg, tk, ls in (r1, r2, r3):
        lg_np = np.asarray(lg).astype(np.float32)
        assert np.allclose(lg_np, logits_ref_np, rtol=3e-2, atol=3e-2)
        assert np.allclose(float(ls), float(loss_ref), rtol=3e-2, atol=3e-2)
        # in-kernel argmax must agree exactly with the logits the kernel produced
        assert np.array_equal(np.asarray(tk), np.argmax(lg_np, axis=-1))

    print("KERNEL_OK")
</pallas_src>

<mosaic_0001>
module attributes {stable_mosaic.version = 11 : i64} {
  func.func @_subword_bert_kernel(%arg0: i32, %arg1: i32, %arg2: memref<2x16x16xbf16, #tpu.memory_space<vmem>>, %arg3: memref<2x16x32xbf16, #tpu.memory_space<vmem>>, %arg4: memref<32x128xbf16, #tpu.memory_space<vmem>>, %arg5: memref<1x128xf32, #tpu.memory_space<vmem>>, %arg6: memref<2x16x1xi32, #tpu.memory_space<vmem>>, %arg7: memref<2x16x128xbf16, #tpu.memory_space<vmem>>, %arg8: memref<2x16x1xi32, #tpu.memory_space<vmem>>, %arg9: memref<2x16x1xf32, #tpu.memory_space<vmem>>, %arg10: memref<2x16x32xbf16, #tpu.memory_space<vmem>>, %arg11: memref<2x16x1xf32, #tpu.memory_space<vmem>>, %arg12: memref<2x16x1xf32, #tpu.memory_space<vmem>>, %arg13: memref<2x16x1xf32, #tpu.memory_space<vmem>>, %arg14: memref<2x16x1xi32, #tpu.memory_space<vmem>>, %arg15: memref<2x16x1xf32, #tpu.memory_space<vmem>>) attributes {dimension_semantics = [#tpu.dimension_semantics<parallel>, #tpu.dimension_semantics<arbitrary>], iteration_bounds = array<i64: 2, 1>, scalar_prefetch = 0 : i64, scratch_operands = 6 : i64, tpu.core_type = #tpu.core_type<tc>, window_params = [{transform_indices = @transform_0, window_bounds = array<i64: 2, 16, 16>}, {transform_indices = @transform_1, window_bounds = array<i64: 2, 16, 32>}, {pipeline_mode = #tpu.pipeline_mode<synchronous>, transform_indices = @transform_2, window_bounds = array<i64: 32, 128>}, {pipeline_mode = #tpu.pipeline_mode<synchronous>, transform_indices = @transform_3, window_bounds = array<i64: 1, 128>}, {transform_indices = @transform_4, window_bounds = array<i64: 2, 16, 1>}, {transform_indices = @transform_5, window_bounds = array<i64: 2, 16, 128>}, {transform_indices = @transform_6, window_bounds = array<i64: 2, 16, 1>}, {transform_indices = @transform_7, window_bounds = array<i64: 2, 16, 1>}]} {
    %c0_i32 = arith.constant 0 : i32
    %0 = arith.cmpi eq, %arg1, %c0_i32 : i32
    %1 = arith.extui %0 : i1 to i32
    %c0_i32_0 = arith.constant 0 : i32
    %2 = arith.cmpi ne, %1, %c0_i32_0 : i32
    scf.if %2 {
      %cst_59 = arith.constant 0xFF800000 : f32
      %71 = vector.broadcast %cst_59 : f32 to vector<2x16x1xf32>
      %c0_60 = arith.constant 0 : index
      %c0_61 = arith.constant 0 : index
      %c0_62 = arith.constant 0 : index
      %72 = vector.load %arg11[%c0_60, %c0_61, %c0_62] : memref<2x16x1xf32, #tpu.memory_space<vmem>>, vector<2x16x1xf32>
      tpu.vector_store %arg11[%c0_60, %c0_61, %c0_62], %71 {strides = array<i32>} : memref<2x16x1xf32, #tpu.memory_space<vmem>>, vector<2x16x1xf32>,
      %cst_63 = arith.constant 0.000000e+00 : f32
      %73 = vector.broadcast %cst_63 : f32 to vector<2x16x1xf32>
      %c0_64 = arith.constant 0 : index
      %c0_65 = arith.constant 0 : index
      %c0_66 = arith.constant 0 : index
      %74 = vector.load %arg12[%c0_64, %c0_65, %c0_66] : memref<2x16x1xf32, #tpu.memory_space<vmem>>, vector<2x16x1xf32>
      tpu.vector_store %arg12[%c0_64, %c0_65, %c0_66], %73 {strides = array<i32>} : memref<2x16x1xf32, #tpu.memory_space<vmem>>, vector<2x16x1xf32>,
      %cst_67 = arith.constant 0xFF800000 : f32
      %75 = vector.broadcast %cst_67 : f32 to vector<2x16x1xf32>
      %c0_68 = arith.constant 0 : index
      %c0_69 = arith.constant 0 : index
      %c0_70 = arith.constant 0 : index
      %76 = vector.load %arg13[%c0_68, %c0_69, %c0_70] : memref<2x16x1xf32, #tpu.memory_space<vmem>>, vector<2x16x1xf32>
      tpu.vector_store %arg13[%c0_68, %c0_69, %c0_70], %75 {strides = array<i32>} : memref<2x16x1xf32, #tpu.memory_space<vmem>>, vector<2x16x1xf32>,
      %c0_i32_71 = arith.constant 0 : i32
      %77 = vector.broadcast %c0_i32_71 : i32 to vector<2x16x1xi32>
      %c0_72 = arith.constant 0 : index
      %c0_73 = arith.constant 0 : index
      %c0_74 = arith.constant 0 : index
      %78 = vector.load %arg14[%c0_72, %c0_73, %c0_74] : memref<2x16x1xi32, #tpu.memory_space<vmem>>, vector<2x16x1xi32>
      tpu.vector_store %arg14[%c0_72, %c0_73, %c0_74], %77 {strides = array<i32>} : memref<2x16x1xi32, #tpu.memory_space<vmem>>, vector<2x16x1xi32>,
      %cst_75 = arith.constant 0.000000e+00 : f32
      %79 = vector.broadcast %cst_75 : f32 to vector<2x16x1xf32>
      %c0_76 = arith.constant 0 : index
      %c0_77 = arith.constant 0 : index
      %c0_78 = arith.constant 0 : index
      %80 = vector.load %arg15[%c0_76, %c0_77, %c0_78] : memref<2x16x1xf32, #tpu.memory_space<vmem>>, vector<2x16x1xf32>
      tpu.vector_store %arg15[%c0_76, %c0_77, %c0_78], %79 {strides = array<i32>} : memref<2x16x1xf32, #tpu.memory_space<vmem>>, vector<2x16x1xf32>,
      %c0_79 = arith.constant 0 : index
      %c0_80 = arith.constant 0 : index
      %c0_81 = arith.constant 0 : index
      %81 = vector.load %arg2[%c0_79, %c0_80, %c0_81] : memref<2x16x16xbf16, #tpu.memory_space<vmem>>, vector<2x16x16xbf16>
      %c0_82 = arith.constant 0 : index
      %c0_83 = arith.constant 0 : index
      %c0_84 = arith.constant 0 : index
      %82 = vector.load %arg3[%c0_82, %c0_83, %c0_84] : memref<2x16x32xbf16, #tpu.memory_space<vmem>>, vector<2x16x32xbf16>
      "tpu.trace_start"() <{level = 10 : i32, message = "bws,bsh->bwh"}> : () -> ()
      %cst_85 = arith.constant dense<0.000000e+00> : vector<2x16x32xf32>
      %83 = tpu.matmul %81, %82, %cst_85 {dimension_numbers = #tpu.dot_dimension_numbers<[2], [1], [1], [2], [0, 0, 0, 1, 1, 2], [0], [0]>} : vector<2x16x16xbf16>, vector<2x16x32xbf16>, vector<2x16x32xf32> -> vector<2x16x32xf32>
      "tpu.trace_stop"() : () -> ()
      %84 = arith.truncf %83 : vector<2x16x32xf32> to vector<2x16x32xbf16>
      %c0_86 = arith.constant 0 : index
      %c0_87 = arith.constant 0 : index
      %c0_88 = arith.constant 0 : index
      %85 = vector.load %arg10[%c0_86, %c0_87, %c0_88] : memref<2x16x32xbf16, #tpu.memory_space<vmem>>, vector<2x16x32xbf16>
      tpu.vector_store %arg10[%c0_86, %c0_87, %c0_88], %84 {strides = array<i32>} : memref<2x16x32xbf16, #tpu.memory_space<vmem>>, vector<2x16x32xbf16>,
    } else {
    }
    %c0 = arith.constant 0 : index
    %c0_1 = arith.constant 0 : index
    %3 = vector.load %arg4[%c0, %c0_1] : memref<32x128xbf16, #tpu.memory_space<vmem>>, vector<32x128xbf16>
    %c0_2 = arith.constant 0 : index
    %c0_3 = arith.constant 0 : index
    %4 = vector.load %arg5[%c0_2, %c0_3] : memref<1x128xf32, #tpu.memory_space<vmem>>, vector<1x128xf32>
    %5 = vector.shape_cast %4 : vector<1x128xf32> to vector<1x1x128xf32>
    %c0_4 = arith.constant 0 : index
    %c0_5 = arith.constant 0 : index
    %c0_6 = arith.constant 0 : index
    %6 = vector.load %arg10[%c0_4, %c0_5, %c0_6] : memref<2x16x32xbf16, #tpu.memory_space<vmem>>, vector<2x16x32xbf16>
    %7 = vector.shape_cast %6 : vector<2x16x32xbf16> to vector<32x32xbf16>
    %cst = arith.constant dense<0.000000e+00> : vector<32x128xf32>
    %8 = tpu.matmul %7, %3, %cst {dimension_numbers = #tpu.dot_dimension_numbers<[1], [0], [0], [1], [0, 0, 1, 1], [], []>} : vector<32x32xbf16>, vector<32x128xbf16>, vector<32x128xf32> -> vector<32x128xf32>
    %9 = vector.shape_cast %8 : vector<32x128xf32> to vector<2x16x128xf32>
    %10 = vector.broadcast %5 : vector<1x1x128xf32> to vector<2x16x128xf32>
    %11 = arith.addf %9, %10 : vector<2x16x128xf32>
    %12 = arith.truncf %11 : vector<2x16x128xf32> to vector<2x16x128xbf16>
    %c0_7 = arith.constant 0 : index
    %c0_8 = arith.constant 0 : index
    %c0_9 = arith.constant 0 : index
    %13 = vector.load %arg7[%c0_7, %c0_8, %c0_9] : memref<2x16x128xbf16, #tpu.memory_space<vmem>>, vector<2x16x128xbf16>
    tpu.vector_store %arg7[%c0_7, %c0_8, %c0_9], %12 {strides = array<i32>} : memref<2x16x128xbf16, #tpu.memory_space<vmem>>, vector<2x16x128xbf16>,
    %14 = arith.extf %12 : vector<2x16x128xbf16> to vector<2x16x128xf32>
    %15 = tpu.iota {dimensions = array<i32: 2>} : vector<1x1x128xi32>
    %cst_10 = arith.constant dense<0xFF800000> : vector<2x16xf32>
    %16 = vector.multi_reduction <maximumf>, %14, %cst_10 [2] : vector<2x16x128xf32> to vector<2x16xf32>
    %17 = vector.shape_cast %16 : vector<2x16xf32> to vector<2x16x1xf32>
    %18 = vector.broadcast %17 : vector<2x16x1xf32> to vector<2x16x128xf32>
    %19 = arith.cmpf oeq, %14, %18 : vector<2x16x128xf32>
    %c128_i32 = arith.constant 128 : i32
    %20 = vector.shape_cast %15 : vector<1x1x128xi32> to vector<1x1x128xi32>
    %21 = vector.broadcast %20 : vector<1x1x128xi32> to vector<2x16x128xi32>
    %22 = vector.broadcast %c128_i32 : i32 to vector<2x16x128xi32>
    %23 = arith.select %19, %21, %22 : vector<2x16x128xi1>, vector<2x16x128xi32>
    %cst_11 = arith.constant dense<2147483647> : vector<2x16xi32>
    %24 = vector.multi_reduction <minsi>, %23, %cst_11 [2] : vector<2x16x128xi32> to vector<2x16xi32>
    %25 = vector.shape_cast %24 : vector<2x16xi32> to vector<2x16x1xi32>
    %c128_i32_12 = arith.constant 128 : i32
    %26 = arith.muli %arg1, %c128_i32_12 : i32
    %27 = vector.broadcast %26 : i32 to vector<2x16x1xi32>
    %28 = arith.addi %25, %27 : vector<2x16x1xi32>
    %c0_13 = arith.constant 0 : index
    %c0_14 = arith.constant 0 : index
    %c0_15 = arith.constant 0 : index
    %29 = vector.load %arg13[%c0_13, %c0_14, %c0_15] : memref<2x16x1xf32, #tpu.memory_space<vmem>>, vector<2x16x1xf32>
    %30 = arith.cmpf ogt, %17, %29 : vector<2x16x1xf32>
    %c0_16 = arith.constant 0 : index
    %c0_17 = arith.constant 0 : index
    %c0_18 = arith.constant 0 : index
    %31 = vector.load %arg14[%c0_16, %c0_17, %c0_18] : memref<2x16x1xi32, #tpu.memory_space<vmem>>, vector<2x16x1xi32>
    %32 = arith.select %30, %28, %31 : vector<2x16x1xi1>, vector<2x16x1xi32>
    %c0_19 = arith.constant 0 : index
    %c0_20 = arith.constant 0 : index
    %c0_21 = arith.constant 0 : index
    %33 = vector.load %arg14[%c0_19, %c0_20, %c0_21] : memref<2x16x1xi32, #tpu.memory_space<vmem>>, vector<2x16x1xi32>
    tpu.vector_store %arg14[%c0_19, %c0_20, %c0_21], %32 {strides = array<i32>} : memref<2x16x1xi32, #tpu.memory_space<vmem>>, vector<2x16x1xi32>,
    %c0_22 = arith.constant 0 : index
    %c0_23 = arith.constant 0 : index
    %c0_24 = arith.constant 0 : index
    %34 = vector.load %arg13[%c0_22, %c0_23, %c0_24] : memref<2x16x1xf32, #tpu.memory_space<vmem>>, vector<2x16x1xf32>
    %35 = arith.select %30, %17, %34 : vector<2x16x1xi1>, vector<2x16x1xf32>
    %c0_25 = arith.constant 0 : index
    %c0_26 = arith.constant 0 : index
    %c0_27 = arith.constant 0 : index
    %36 = vector.load %arg13[%c0_25, %c0_26, %c0_27] : memref<2x16x1xf32, #tpu.memory_space<vmem>>, vector<2x16x1xf32>
    tpu.vector_store %arg13[%c0_25, %c0_26, %c0_27], %35 {strides = array<i32>} : memref<2x16x1xf32, #tpu.memory_space<vmem>>, vector<2x16x1xf32>,
    %c0_28 = arith.constant 0 : index
    %c0_29 = arith.constant 0 : index
    %c0_30 = arith.constant 0 : index
    %37 = vector.load %arg11[%c0_28, %c0_29, %c0_30] : memref<2x16x1xf32, #tpu.memory_space<vmem>>, vector<2x16x1xf32>
    %cst_31 = arith.constant dense<0xFF800000> : vector<2x16xf32>
    %38 = vector.multi_reduction <maximumf>, %11, %cst_31 [2] : vector<2x16x128xf32> to vector<2x16xf32>
    %39 = vector.shape_cast %38 : vector<2x16xf32> to vector<2x16x1xf32>
    %40 = arith.maximumf %37, %39 : vector<2x16x1xf32>
    %41 = vector.broadcast %40 : vector<2x16x1xf32> to vector<2x16x128xf32>
    %42 = arith.subf %11, %41 : vector<2x16x128xf32>
    %43 = math.exp %42 : vector<2x16x128xf32>
    %c0_32 = arith.constant 0 : index
    %c0_33 = arith.constant 0 : index
    %c0_34 = arith.constant 0 : index
    %44 = vector.load %arg12[%c0_32, %c0_33, %c0_34] : memref<2x16x1xf32, #tpu.memory_space<vmem>>, vector<2x16x1xf32>
    %c0_35 = arith.constant 0 : index
    %c0_36 = arith.constant 0 : index
    %c0_37 = arith.constant 0 : index
    %45 = vector.load %arg11[%c0_35, %c0_36, %c0_37] : memref<2x16x1xf32, #tpu.memory_space<vmem>>, vector<2x16x1xf32>
    %46 = arith.subf %45, %40 : vector<2x16x1xf32>
    %47 = math.exp %46 : vector<2x16x1xf32>
    %48 = arith.mulf %44, %47 : vector<2x16x1xf32>
    %cst_38 = arith.constant dense<0.000000e+00> : vector<2x16xf32>
    %49 = vector.multi_reduction <add>, %43, %cst_38 [2] : vector<2x16x128xf32> to vector<2x16xf32>
    %50 = vector.shape_cast %49 : vector<2x16xf32> to vector<2x16x1xf32>
    %51 = arith.addf %48, %50 : vector<2x16x1xf32>
    %c0_39 = arith.constant 0 : index
    %c0_40 = arith.constant 0 : index
    %c0_41 = arith.constant 0 : index
    %52 = vector.load %arg12[%c0_39, %c0_40, %c0_41] : memref<2x16x1xf32, #tpu.memory_space<vmem>>, vector<2x16x1xf32>
    tpu.vector_store %arg12[%c0_39, %c0_40, %c0_41], %51 {strides = array<i32>} : memref<2x16x1xf32, #tpu.memory_space<vmem>>, vector<2x16x1xf32>,
    %c0_42 = arith.constant 0 : index
    %c0_43 = arith.constant 0 : index
    %c0_44 = arith.constant 0 : index
    %53 = vector.load %arg11[%c0_42, %c0_43, %c0_44] : memref<2x16x1xf32, #tpu.memory_space<vmem>>, vector<2x16x1xf32>
    tpu.vector_store %arg11[%c0_42, %c0_43, %c0_44], %40 {strides = array<i32>} : memref<2x16x1xf32, #tpu.memory_space<vmem>>, vector<2x16x1xf32>,
    %c0_45 = arith.constant 0 : index
    %c0_46 = arith.constant 0 : index
    %c0_47 = arith.constant 0 : index
    %54 = vector.load %arg6[%c0_45, %c0_46, %c0_47] : memref<2x16x1xi32, #tpu.memory_space<vmem>>, vector<2x16x1xi32>
    %c128_i32_48 = arith.constant 128 : i32
    %55 = arith.muli %arg1, %c128_i32_48 : i32
    %56 = vector.broadcast %55 : i32 to vector<1x1x128xi32>
    %57 = arith.addi %15, %56 : vector<1x1x128xi32>
    %c0_49 = arith.constant 0 : index
    %c0_50 = arith.constant 0 : index
    %c0_51 = arith.constant 0 : index
    %58 = vector.load %arg15[%c0_49, %c0_50, %c0_51] : memref<2x16x1xf32, #tpu.memory_space<vmem>>, vector<2x16x1xf32>
    %59 = vector.broadcast %57 : vector<1x1x128xi32> to vector<2x16x128xi32>
    %60 = vector.broadcast %54 : vector<2x16x1xi32> to vector<2x16x128xi32>
    %61 = arith.cmpi eq, %59, %60 : vector<2x16x128xi32>
    %cst_52 = arith.constant 0.000000e+00 : f32
    %62 = vector.broadcast %cst_52 : f32 to vector<2x16x128xf32>
    %63 = arith.select %61, %11, %62 : vector<2x16x128xi1>, vector<2x16x128xf32>
    %cst_53 = arith.constant dense<0.000000e+00> : vector<2x16xf32>
    %64 = vector.multi_reduction <add>, %63, %cst_53 [2] : vector<2x16x128xf32> to vector<2x16xf32>
    %65 = vector.shape_cast %64 : vector<2x16xf32> to vector<2x16x1xf32>
    %66 = arith.addf %58, %65 : vector<2x16x1xf32>
    %c0_54 = arith.constant 0 : index
    %c0_55 = arith.constant 0 : index
    %c0_56 = arith.constant 0 : index
    %67 = vector.load %arg15[%c0_54, %c0_55, %c0_56] : memref<2x16x1xf32, #tpu.memory_space<vmem>>, vector<2x16x1xf32>
    tpu.vector_store %arg15[%c0_54, %c0_55, %c0_56], %66 {strides = array<i32>} : memref<2x16x1xf32, #tpu.memory_space<vmem>>, vector<2x16x1xf32>,
    %c0_i32_57 = arith.constant 0 : i32
    %68 = arith.cmpi eq, %arg1, %c0_i32_57 : i32
    %69 = arith.extui %68 : i1 to i32
    %c0_i32_58 = arith.constant 0 : i32
    %70 = arith.cmpi ne, %69, %c0_i32_58 : i32
    scf.if %70 {
      %c0_59 = arith.constant 0 : index
      %c0_60 = arith.constant 0 : index
      %c0_61 = arith.constant 0 : index
      %71 = vector.load %arg6[%c0_59, %c0_60, %c0_61] : memref<2x16x1xi32, #tpu.memory_space<vmem>>, vector<2x16x1xi32>
      %c0_i32_62 = arith.constant 0 : i32
      %72 = vector.broadcast %c0_i32_62 : i32 to vector<2x16x1xi32>
      %73 = arith.cmpi ne, %71, %72 : vector<2x16x1xi32>
      %74 = arith.extui %73 : vector<2x16x1xi1> to vector<2x16x1xi32>
      %75 = arith.sitofp %74 : vector<2x16x1xi32> to vector<2x16x1xf32>
      %c0_63 = arith.constant 0 : index
      %c0_64 = arith.constant 0 : index
      %c0_65 = arith.constant 0 : index
      %76 = vector.load %arg11[%c0_63, %c0_64, %c0_65] : memref<2x16x1xf32, #tpu.memory_space<vmem>>, vector<2x16x1xf32>
      %c0_66 = arith.constant 0 : index
      %c0_67 = arith.constant 0 : index
      %c0_68 = arith.constant 0 : index
      %77 = vector.load %arg12[%c0_66, %c0_67, %c0_68] : memref<2x16x1xf32, #tpu.memory_space<vmem>>, vector<2x16x1xf32>
      %78 = math.log %77 : vector<2x16x1xf32>
      %79 = arith.addf %76, %78 : vector<2x16x1xf32>
      %c0_69 = arith.constant 0 : index
      %c0_70 = arith.constant 0 : index
      %c0_71 = arith.constant 0 : index
      %80 = vector.load %arg15[%c0_69, %c0_70, %c0_71] : memref<2x16x1xf32, #tpu.memory_space<vmem>>, vector<2x16x1xf32>
      %81 = arith.subf %79, %80 : vector<2x16x1xf32>
      %82 = arith.mulf %81, %75 : vector<2x16x1xf32>
      %c0_72 = arith.constant 0 : index
      %c0_73 = arith.constant 0 : index
      %c0_74 = arith.constant 0 : index
      %83 = vector.load %arg9[%c0_72, %c0_73, %c0_74] : memref<2x16x1xf32, #tpu.memory_space<vmem>>, vector<2x16x1xf32>
      tpu.vector_store %arg9[%c0_72, %c0_73, %c0_74], %82 {strides = array<i32>} : memref<2x16x1xf32, #tpu.memory_space<vmem>>, vector<2x16x1xf32>,
      %c0_75 = arith.constant 0 : index
      %c0_76 = arith.constant 0 : index
      %c0_77 = arith.constant 0 : index
      %84 = vector.load %arg14[%c0_75, %c0_76, %c0_77] : memref<2x16x1xi32, #tpu.memory_space<vmem>>, vector<2x16x1xi32>
      %c0_78 = arith.constant 0 : index
      %c0_79 = arith.constant 0 : index
      %c0_80 = arith.constant 0 : index
      %85 = vector.load %arg8[%c0_78, %c0_79, %c0_80] : memref<2x16x1xi32, #tpu.memory_space<vmem>>, vector<2x16x1xi32>
      tpu.vector_store %arg8[%c0_78, %c0_79, %c0_80], %84 {strides = array<i32>} : memref<2x16x1xi32, #tpu.memory_space<vmem>>, vector<2x16x1xi32>,
    } else {
    }
    return
  }
  func.func @transform_0(%arg0: i32, %arg1: i32) -> (i32, i32, i32) {
    %c0_i32 = arith.constant 0 : i32
    %c0_i32_0 = arith.constant 0 : i32
    %c0_i32_1 = arith.constant 0 : i32
    return %arg0, %c0_i32, %c0_i32_0 : i32, i32, i32
  }
  func.func @transform_1(%arg0: i32, %arg1: i32) -> (i32, i32, i32) {
    %c0_i32 = arith.constant 0 : i32
    %c0_i32_0 = arith.constant 0 : i32
    %c0_i32_1 = arith.constant 0 : i32
    return %arg0, %c0_i32, %c0_i32_0 : i32, i32, i32
  }
  func.func @transform_2(%arg0: i32, %arg1: i32) -> (i32, i32) {
    %c0_i32 = arith.constant 0 : i32
    %c0_i32_0 = arith.constant 0 : i32
    return %c0_i32, %arg1 : i32, i32
  }
  func.func @transform_3(%arg0: i32, %arg1: i32) -> (i32, i32) {
    %c0_i32 = arith.constant 0 : i32
    %c0_i32_0 = arith.constant 0 : i32
    return %c0_i32, %arg1 : i32, i32
  }
  func.func @transform_4(%arg0: i32, %arg1: i32) -> (i32, i32, i32) {
    %c0_i32 = arith.constant 0 : i32
    %c0_i32_0 = arith.constant 0 : i32
    %c0_i32_1 = arith.constant 0 : i32
    return %arg0, %c0_i32, %c0_i32_0 : i32, i32, i32
  }
  func.func @transform_5(%arg0: i32, %arg1: i32) -> (i32, i32, i32) {
    %c0_i32 = arith.constant 0 : i32
    %c0_i32_0 = arith.constant 0 : i32
    return %arg0, %c0_i32, %arg1 : i32, i32, i32
  }
  func.func @transform_6(%arg0: i32, %arg1: i32) -> (i32, i32, i32) {
    %c0_i32 = arith.constant 0 : i32
    %c0_i32_0 = arith.constant 0 : i32
    %c0_i32_1 = arith.constant 0 : i32
    return %arg0, %c0_i32, %c0_i32_0 : i32, i32, i32
  }
  func.func @transform_7(%arg0: i32, %arg1: i32) -> (i32, i32, i32) {
    %c0_i32 = arith.constant 0 : i32
    %c0_i32_0 = arith.constant 0 : i32
    %c0_i32_1 = arith.constant 0 : i32
    return %arg0, %c0_i32, %c0_i32_0 : i32, i32, i32
  }
}

</mosaic_0001>

<llo_original>
// kernel: tpu_custom_call.1
$region0: #{tpu_custom_call.1}
  #allocation0 [shape = 'u32[]', space=smem, size = 0x4, offset = 0x4, fixed_abs, tag = 'smem constant byte address 0x4 - core index']
  #allocation1 [shape = 'u32[144,128]{1,0:T(1,128)}', space=vmem, size = 0x12000, scoped, tag = 'internal scratch']
  #allocation2 [shape = 'bf16[2,16,32]{2,1,0:T(8,128)(2,1)}', space=vmem, size = 0x2000, scoped, tag = 'scratch operand']
  #allocation3 [shape = 'f32[2,16,1]{2,1,0:T(8,128)}', space=vmem, size = 0x4000, scoped, tag = 'scratch operand']
  #allocation4 [shape = 'f32[2,16,1]{2,1,0:T(8,128)}', space=vmem, size = 0x4000, scoped, tag = 'scratch operand']
  #allocation5 [shape = 'f32[2,16,1]{2,1,0:T(8,128)}', space=vmem, size = 0x4000, scoped, tag = 'scratch operand']
  #allocation6 [shape = 's32[2,16,1]{2,1,0:T(8,128)}', space=vmem, size = 0x4000, scoped, tag = 'scratch operand']
  #allocation7 [shape = 'f32[2,16,1]{2,1,0:T(8,128)}', space=vmem, size = 0x4000, scoped, tag = 'scratch operand']
  %s0 = inlined_call_operand.vmem [shape: bf16[4,16,16], index: 0, kind: input, shape index: {}]
  %s1 = inlined_call_operand.vmem [shape: bf16[4,16,32], index: 1, kind: input, shape index: {}]
  %s2 = inlined_call_operand.hbm [shape: bf16[32,128], index: 2, kind: input, shape index: {}]
  %s3 = inlined_call_operand.vmem [shape: f32[1,128], index: 3, kind: input, shape index: {}]
  %s4 = inlined_call_operand.vmem [shape: s32[4,16,1], index: 4, kind: input, shape index: {}]
  %s5 = inlined_call_operand.hbm [shape: bf16[4,16,128], index: 5, kind: output, shape index: {0}]
  %s6 = inlined_call_operand.vmem [shape: s32[4,16,1], index: 6, kind: output, shape index: {1}]
  %s7 = inlined_call_operand.vmem [shape: f32[4,16,1], index: 7, kind: output, shape index: {2}]
  %8 = xla_tuple %s5, %s6, %s7
  %s9 = sld [smem:[#allocation0]]
  $region81: #{tpu_custom_call.1} parent=0
    _
  %s11 = ssub.s32 1, %s9
  %s12 = scalar_select 0, %s11, %s9
  $region1: #{tpu_custom_call.1} parent=0
    #allocation8 [shape = 'u8[8192]{0}', space=vmem, size = 0x2000, scoped, tag = 'input window, operand 2, single buffered']
    #allocation9 [shape = 's32[2]{0}', space=sflag, size = 0x8, scoped, tag = 'scoped memory for tpu_custom_call.1']
    #allocation10 [shape = 's32[2]{0}', space=sflag, size = 0x8, scoped, tag = 'scoped memory for tpu_custom_call.1']
    #allocation11 [shape = 'u8[16384]{0}', space=vmem, size = 0x4000, scoped, tag = 'output window, operand 0']
    %13 = vsyncpa [#allocation9], 0
    %14 = vsyncpa [#allocation10], 0
    %s15 = scalar_lea.sflag [#allocation10], 1
    %16 = vsyncpa %s15, 0
    loop: start=0, step=1, limit=4
    $region2: #{tpu_custom_call.1} parent=1 // loop_pre_header
      _
    $region3: #{tpu_custom_call.1} parent=1 // loop_header
      %s18 = sphi 0, %s22
      %p19 = scmp.ge.s32.totalorder %s18, 4
      %s25 = sphi 0, %s37
      %s26 = sphi 0, %s33
      %s27 = sphi 0, %s25
      %s28 = sphi 0, %s26
      %s29 = sphi 0, %s27
      %s30 = sphi 0, %s28
      %s40 = sphi 0, %s42
      %s43 = sphi 0, %s40
      %s44 = sphi 0, %s43
      %s60 = sphi 0, %s44
      %s66 = sphi 0, %s68
      %s69 = sphi 0, %s66
      %s70 = sphi 0, %s69
      %s86 = sphi 0, %s70
      %s92 = sphi 0, %s94
      %s95 = sphi 0, %s92
      %s96 = sphi 0, %s95
      %s112 = sphi 0, %s96
      %s118 = sphi 0, %s120
      %s121 = sphi 0, %s118
      %s122 = sphi 0, %s121
      %s138 = sphi 0, %s122
      %s144 = sphi 0, %s146
      %s147 = sphi 0, %s144
      %s148 = sphi 0, %s147
      %s164 = sphi 0, %s148
      %s172 = sphi 0, %s174
      %s175 = sphi 0, %s172
      %s176 = sphi 0, %s175
      %s192 = sphi 0, %s176
      %s198 = sphi 0, %s200
      %s201 = sphi 0, %s198
      %s202 = sphi 0, %s201
      %s218 = sphi 0, %s202
      %s224 = sphi 0, %s226
      %s227 = sphi 0, %s224
      %s228 = sphi 0, %s227
      %s244 = sphi 0, %s228
    $region4: #{tpu_custom_call.1} parent=1 // loop_header_branch
      %21 = sbr.rel (%p19) target = $region8
    $region5: #{tpu_custom_call.1} parent=1 // loop_body
      %s23 = ssub.s32 %s18, 1
      %s24 = ssub.s32 %s18, 2
      %s31 = sadd.s32 1, %s26
      %p32 = scmp.ge.s32.totalorder %s31, 1
      %s33 = scalar_select %p32, 0, %s31
      %s34 = sadd.s32 1, %s25
      %s35 = scalar_select %p32, %s34, %s25
      %p36 = scmp.ge.s32.totalorder %s35, 2
      %s37 = scalar_select %p36, 0, %s35
      %s38 = ssub.s32 %s25, %s37
      %p39 = scmp.eq.s32.totalorder %s38, 0
      %s41 = sadd.s32 %s40, 1
      %s42 = scalar_select %p39, %s40, %s41
      %p45 = pneg %p39
      %p46 = scmp.eq.s32.totalorder %s18, 1
      %p47 = por %p45, %p46
      %p48 = scmp.ne.s32.totalorder %s40, %s43
      %p49 = scmp.eq.s32.totalorder %s18, 0
      %p50 = por %p48, %p49
      %p51 = scmp.ne.s32.totalorder %s40, %s43
      %p52 = scmp.eq.s32.totalorder %s23, 1
      %p53 = por %p51, %p52
      %p54 = scmp.ne.s32.totalorder %s43, %s44
      %p55 = scmp.eq.s32.totalorder %s23, 0
      %p56 = por %p54, %p55
      %p57 = scmp.ne.s32.totalorder %s43, %s44
      %p58 = scmp.eq.s32.totalorder %s24, 1
      %p59 = por %p57, %p58
      %p61 = scmp.ne.s32.totalorder %s44, %s60
      %p62 = scmp.eq.s32.totalorder %s24, 0
      %p63 = por %p61, %p62
      %s64 = ssub.s32 %s25, %s37
      %p65 = scmp.eq.s32.totalorder %s64, 0
      %s67 = sadd.s32 %s66, 1
      %s68 = scalar_select %p65, %s66, %s67
      %p71 = pneg %p65
      %p72 = scmp.eq.s32.totalorder %s18, 1
      %p73 = por %p71, %p72
      %p74 = scmp.ne.s32.totalorder %s66, %s69
      %p75 = scmp.eq.s32.totalorder %s18, 0
      %p76 = por %p74, %p75
      %p77 = scmp.ne.s32.totalorder %s66, %s69
      %p78 = scmp.eq.s32.totalorder %s23, 1
      %p79 = por %p77, %p78
      %p80 = scmp.ne.s32.totalorder %s69, %s70
      %p81 = scmp.eq.s32.totalorder %s23, 0
      %p82 = por %p80, %p81
      %p83 = scmp.ne.s32.totalorder %s69, %s70
      %p84 = scmp.eq.s32.totalorder %s24, 1
      %p85 = por %p83, %p84
      %p87 = scmp.ne.s32.totalorder %s70, %s86
      %p88 = scmp.eq.s32.totalorder %s24, 0
      %p89 = por %p87, %p88
      %s90 = ssub.s32 %s26, %s33
      %p91 = scmp.eq.s32.totalorder %s90, 0
      %s93 = sadd.s32 %s92, 1
      %s94 = scalar_select %p91, %s92, %s93
      %p97 = pneg %p91
      %p98 = scmp.eq.s32.totalorder %s18, 1
      %p99 = por %p97, %p98
      %p100 = scmp.ne.s32.totalorder %s92, %s95
      %p101 = scmp.eq.s32.totalorder %s18, 0
      %p102 = por %p100, %p101
      %p103 = scmp.ne.s32.totalorder %s92, %s95
      %p104 = scmp.eq.s32.totalorder %s23, 1
      %p105 = por %p103, %p104
      %p106 = scmp.ne.s32.totalorder %s95, %s96
      %p107 = scmp.eq.s32.totalorder %s23, 0
      %p108 = por %p106, %p107
      %p109 = scmp.ne.s32.totalorder %s95, %s96
      %p110 = scmp.eq.s32.totalorder %s24, 1
      %p111 = por %p109, %p110
      %p113 = scmp.ne.s32.totalorder %s96, %s112
      %p114 = scmp.eq.s32.totalorder %s24, 0
      %p115 = por %p113, %p114
      %s116 = ssub.s32 %s26, %s33
      %p117 = scmp.eq.s32.totalorder %s116, 0
      %s119 = sadd.s32 %s118, 1
      %s120 = scalar_select %p117, %s118, %s119
      %p123 = pneg %p117
      %p124 = scmp.eq.s32.totalorder %s18, 1
      %p125 = por %p123, %p124
      %p126 = scmp.ne.s32.totalorder %s118, %s121
      %p127 = scmp.eq.s32.totalorder %s18, 0
      %p128 = por %p126, %p127
      %p129 = scmp.ne.s32.totalorder %s118, %s121
      %p130 = scmp.eq.s32.totalorder %s23, 1
      %p131 = por %p129, %p130
      %p132 = scmp.ne.s32.totalorder %s121, %s122
      %p133 = scmp.eq.s32.totalorder %s23, 0
      %p134 = por %p132, %p133
      %p135 = scmp.ne.s32.totalorder %s121, %s122
      %p136 = scmp.eq.s32.totalorder %s24, 1
      %p137 = por %p135, %p136
      %p139 = scmp.ne.s32.totalorder %s122, %s138
      %p140 = scmp.eq.s32.totalorder %s24, 0
      %p141 = por %p139, %p140
      %s142 = ssub.s32 %s25, %s37
      %p143 = scmp.eq.s32.totalorder %s142, 0
      %s145 = sadd.s32 %s144, 1
      %s146 = scalar_select %p143, %s144, %s145
      %p149 = pneg %p143
      %p150 = scmp.eq.s32.totalorder %s18, 1
      %p151 = por %p149, %p150
      %p152 = scmp.ne.s32.totalorder %s144, %s147
      %p153 = scmp.eq.s32.totalorder %s18, 0
      %p154 = por %p152, %p153
      %p155 = scmp.ne.s32.totalorder %s144, %s147
      %p156 = scmp.eq.s32.totalorder %s23, 1
      %p157 = por %p155, %p156
      %p158 = scmp.ne.s32.totalorder %s147, %s148
      %p159 = scmp.eq.s32.totalorder %s23, 0
      %p160 = por %p158, %p159
      %p161 = scmp.ne.s32.totalorder %s147, %s148
      %p162 = scmp.eq.s32.totalorder %s24, 1
      %p163 = por %p161, %p162
      %p165 = scmp.ne.s32.totalorder %s148, %s164
      %p166 = scmp.eq.s32.totalorder %s24, 0
      %p167 = por %p165, %p166
      %s168 = ssub.s32 %s25, %s37
      %s169 = ssub.s32 %s26, %s33
      %s170 = sor.u32 %s168, %s169
      %p171 = scmp.eq.s32.totalorder %s170, 0
      %s173 = sadd.s32 %s172, 1
      %s174 = scalar_select %p171, %s172, %s173
      %p177 = pneg %p171
      %p178 = scmp.eq.s32.totalorder %s18, 1
      %p179 = por %p177, %p178
      %p180 = scmp.ne.s32.totalorder %s172, %s175
      %p181 = scmp.eq.s32.totalorder %s18, 0
      %p182 = por %p180, %p181
      %p183 = scmp.ne.s32.totalorder %s172, %s175
      %p184 = scmp.eq.s32.totalorder %s23, 1
      %p185 = por %p183, %p184
      %p186 = scmp.ne.s32.totalorder %s175, %s176
      %p187 = scmp.eq.s32.totalorder %s23, 0
      %p188 = por %p186, %p187
      %p189 = scmp.ne.s32.totalorder %s175, %s176
      %p190 = scmp.eq.s32.totalorder %s24, 1
      %p191 = por %p189, %p190
      %p193 = scmp.ne.s32.totalorder %s176, %s192
      %p194 = scmp.eq.s32.totalorder %s24, 0
      %p195 = por %p193, %p194
      %s196 = ssub.s32 %s25, %s37
      %p197 = scmp.eq.s32.totalorder %s196, 0
      %s199 = sadd.s32 %s198, 1
      %s200 = scalar_select %p197, %s198, %s199
      %p203 = pneg %p197
      %p204 = scmp.eq.s32.totalorder %s18, 1
      %p205 = por %p203, %p204
      %p206 = scmp.ne.s32.totalorder %s198, %s201
      %p207 = scmp.eq.s32.totalorder %s18, 0
      %p208 = por %p206, %p207
      %p209 = scmp.ne.s32.totalorder %s198, %s201
      %p210 = scmp.eq.s32.totalorder %s23, 1
      %p211 = por %p209, %p210
      %p212 = scmp.ne.s32.totalorder %s201, %s202
      %p213 = scmp.eq.s32.totalorder %s23, 0
      %p214 = por %p212, %p213
      %p215 = scmp.ne.s32.totalorder %s201, %s202
      %p216 = scmp.eq.s32.totalorder %s24, 1
      %p217 = por %p215, %p216
      %p219 = scmp.ne.s32.totalorder %s202, %s218
      %p220 = scmp.eq.s32.totalorder %s24, 0
      %p221 = por %p219, %p220
      %s222 = ssub.s32 %s25, %s37
      %p223 = scmp.eq.s32.totalorder %s222, 0
      %s225 = sadd.s32 %s224, 1
      %s226 = scalar_select %p223, %s224, %s225
      %p229 = pneg %p223
      %p230 = scmp.eq.s32.totalorder %s18, 1
      %p231 = por %p229, %p230
      %p232 = scmp.ne.s32.totalorder %s224, %s227
      %p233 = scmp.eq.s32.totalorder %s18, 0
      %p234 = por %p232, %p233
      %p235 = scmp.ne.s32.totalorder %s224, %s227
      %p236 = scmp.eq.s32.totalorder %s23, 1
      %p237 = por %p235, %p236
      %p238 = scmp.ne.s32.totalorder %s227, %s228
      %p239 = scmp.eq.s32.totalorder %s23, 0
      %p240 = por %p238, %p239
      %p241 = scmp.ne.s32.totalorder %s227, %s228
      %p242 = scmp.eq.s32.totalorder %s24, 1
      %p243 = por %p241, %p242
      %p245 = scmp.ne.s32.totalorder %s228, %s244
      %p246 = scmp.eq.s32.totalorder %s24, 0
      %p247 = por %p245, %p246
      %p248 = scmp.le.s32.totalorder 1, %s18
      %p249 = scmp.lt.s32.totalorder %s18, 3
      %p250 = pnand %p248, %p249
      %p251 = pneg %p250
      // Predicated region
      $region9: #{tpu_custom_call.1} parent=5 // pred_check
        _
      $region10: #{tpu_custom_call.1} parent=5 // pred_check_branch
        %253 = sbr.rel (%p250) target = $region12
      $region11: #{tpu_custom_call.1} parent=5 // pred_region
        %s254 = ssub.s32 %s18, 1
        // Predicated region
        $region13: #{tpu_custom_call.1} parent=11 // pred_check
          %p255 = pneg %p108
        $region14: #{tpu_custom_call.1} parent=11 // pred_check_branch
          %257 = sbr.rel (%p255) target = $region16
        $region15: #{tpu_custom_call.1} parent=11 // pred_region
          %s259 = ssub.s32 256, 256
          %260 = vsyncadd [#allocation9], %s259
          %s261 = smul.addr %s28, 64
          %s262 = scalar_lea.hbm %s2, %s261
          %s263 = sshll.u32 [#allocation8], 4
          %s264 = int_to_ptr.vmem [resolvable:$true] %s263
          %269 = dma.hbm_to_vmem [thread:$0]  %s262, 256, %s264, [#allocation9], 64, 64, 4
        $region16: #{tpu_custom_call.1} parent=11 // pred_fallthru
          _
        // Predicated region
        $region17: #{tpu_custom_call.1} parent=11 // pred_check
          %p270 = pneg %p134
        $region18: #{tpu_custom_call.1} parent=11 // pred_check_branch
          %272 = sbr.rel (%p270) target = $region20
        $region19: #{tpu_custom_call.1} parent=11 // pred_region
          %p273 = scmp.lt.s32.totalorder %s28, 0
          %s274 = scalar_select %p273, %s28, 0
          %s275 = scalar_lea.vmem %s3, %s274
        $region20: #{tpu_custom_call.1} parent=11 // pred_fallthru
          _
      $region12: #{tpu_custom_call.1} parent=5 // pred_fallthru
        _
      %p276 = scmp.lt.s32.totalorder %s18, 2
      // Predicated region
      $region21: #{tpu_custom_call.1} parent=5 // pred_check
        %p277 = pneg %p276
      $region22: #{tpu_custom_call.1} parent=5 // pred_check_branch
        %279 = sbr.rel (%p277) target = $region24
      $region23: #{tpu_custom_call.1} parent=5 // pred_region
        // Predicated region
        $region25: #{tpu_custom_call.1} parent=23 // pred_check
          %p280 = pneg %p50
        $region26: #{tpu_custom_call.1} parent=23 // pred_check_branch
          %282 = sbr.rel (%p280) target = $region28
        $region27: #{tpu_custom_call.1} parent=23 // pred_region
          %s283 = smul.u32 2, %s25
          %p284 = scmp.lt.s32.totalorder %s283, 3
          %s285 = scalar_select %p284, %s283, 3
          %s286 = smul.addr %s285, 2
          %s287 = smul.addr %s286, 4
          %s288 = scalar_lea.vmem %s0, %s287
          %s289 = smul.u32 2, %s25
        $region28: #{tpu_custom_call.1} parent=23 // pred_fallthru
          _
        // Predicated region
        $region29: #{tpu_custom_call.1} parent=23 // pred_check
          %p290 = pneg %p76
        $region30: #{tpu_custom_call.1} parent=23 // pred_check_branch
          %292 = sbr.rel (%p290) target = $region32
        $region31: #{tpu_custom_call.1} parent=23 // pred_region
          %s293 = smul.u32 2, %s25
          %p294 = scmp.lt.s32.totalorder %s293, 3
          %s295 = scalar_select %p294, %s293, 3
          %s296 = smul.addr %s295, 2
          %s297 = smul.addr %s296, 4
          %s298 = scalar_lea.vmem %s1, %s297
          %s299 = smul.u32 2, %s25
        $region32: #{tpu_custom_call.1} parent=23 // pred_fallthru
          _
        // Predicated region
        $region33: #{tpu_custom_call.1} parent=23 // pred_check
          %p300 = pneg %p154
        $region34: #{tpu_custom_call.1} parent=23 // pred_check_branch
          %302 = sbr.rel (%p300) target = $region36
        $region35: #{tpu_custom_call.1} parent=23 // pred_region
          %s303 = smul.u32 2, %s25
          %p304 = scmp.lt.s32.totalorder %s303, 3
          %s305 = scalar_select %p304, %s303, 3
          %s306 = smul.addr %s305, 2
          %s307 = smul.addr %s306, 8
          %s308 = scalar_lea.vmem %s4, %s307
          %s309 = smul.u32 2, %s25
        $region36: #{tpu_custom_call.1} parent=23 // pred_fallthru
          _
      $region24: #{tpu_custom_call.1} parent=5 // pred_fallthru
        _
      %p310 = scmp.le.s32.totalorder 1, %s18
      %p311 = scmp.lt.s32.totalorder %s18, 3
      %p312 = pnand %p310, %p311
      %p313 = pneg %p312
      // Predicated region
      $region37: #{tpu_custom_call.1} parent=5 // pred_check
        _
      $region38: #{tpu_custom_call.1} parent=5 // pred_check_branch
        %315 = sbr.rel (%p312) target = $region40
      $region39: #{tpu_custom_call.1} parent=5 // pred_region
        %s316 = ssub.s32 %s18, 1
        // Predicated region
        $region41: #{tpu_custom_call.1} parent=39 // pred_check
          %p317 = pneg %p108
        $region42: #{tpu_custom_call.1} parent=39 // pred_check_branch
          %319 = sbr.rel (%p317) target = $region44
        $region43: #{tpu_custom_call.1} parent=39 // pred_region
          %320 = dma.done [#allocation9], 256
        $region44: #{tpu_custom_call.1} parent=39 // pred_fallthru
          _
        %s321 = smul.u32 2, %s27
        %p322 = scmp.lt.s32.totalorder %s321, 3
        %s323 = scalar_select %p322, %s321, 3
        %s324 = smul.addr %s323, 2
        %s325 = smul.addr %s324, 4
        %s326 = scalar_lea.vmem %s0, %s325
        %p327 = pneg %p56
        %p328 = pneg %p53
        %s329 = smul.u32 2, %s27
        %p330 = scmp.lt.s32.totalorder %s329, 3
        %s331 = scalar_select %p330, %s329, 3
        %s332 = smul.addr %s331, 2
        %s333 = smul.addr %s332, 4
        %s334 = scalar_lea.vmem %s1, %s333
        %p335 = pneg %p82
        %p336 = pneg %p79
        %p337 = pneg %p108
        %p338 = pneg %p105
        %p339 = scmp.lt.s32.totalorder %s28, 0
        %s340 = scalar_select %p339, %s28, 0
        %s341 = scalar_lea.vmem %s3, %s340
        %p342 = pneg %p134
        %p343 = pneg %p131
        %s344 = smul.u32 2, %s27
        %p345 = scmp.lt.s32.totalorder %s344, 3
        %s346 = scalar_select %p345, %s344, 3
        %s347 = smul.addr %s346, 2
        %s348 = smul.addr %s347, 8
        %s349 = scalar_lea.vmem %s4, %s348
        %p350 = pneg %p160
        %p351 = pneg %p157
        %p352 = pneg %p188
        %p353 = pneg %p185
        %s354 = sand.u32 %s175, 1
        %s355 = scalar_lea.sflag [#allocation10], %s354
        %s356 = sand.u32 %s175, 1
        %s357 = smul.addr %s356, 16
        %s358 = scalar_lea.vmem [#allocation11], %s357
        %p359 = pneg %p214
        %p360 = pneg %p211
        %s361 = smul.u32 2, %s27
        %p362 = scmp.lt.s32.totalorder %s361, 3
        %s363 = scalar_select %p362, %s361, 3
        %s364 = smul.addr %s363, 2
        %s365 = smul.addr %s364, 8
        %s366 = scalar_lea.vmem %s6, %s365
        %p367 = pneg %p240
        %p368 = pneg %p237
        %s369 = smul.u32 2, %s27
        %p370 = scmp.lt.s32.totalorder %s369, 3
        %s371 = scalar_select %p370, %s369, 3
        %s372 = smul.addr %s371, 2
        %s373 = smul.addr %s372, 8
        %s374 = scalar_lea.vmem %s7, %s373
        %s375 = smul.u32 2, %s27
        %p376 = scmp.lt.s32.totalorder %s375, 3
        %s377 = scalar_select %p376, %s375, 3
        %s378 = smul.addr %s377, 2
        %s379 = smul.addr %s378, 4
        %s380 = scalar_lea.vmem %s0, %s379
        %s381 = smul.u32 2, %s27
        %s382 = smul.u32 2, %s27
        %p383 = scmp.lt.s32.totalorder %s382, 3
        %s384 = scalar_select %p383, %s382, 3
        %s385 = smul.addr %s384, 2
        %s386 = smul.addr %s385, 4
        %s387 = scalar_lea.vmem %s1, %s386
        %s388 = smul.u32 2, %s27
        %p389 = scmp.lt.s32.totalorder %s28, 0
        %s390 = scalar_select %p389, %s28, 0
        %s391 = scalar_lea.vmem %s3, %s390
        %s392 = smul.u32 2, %s27
        %p393 = scmp.lt.s32.totalorder %s392, 3
        %s394 = scalar_select %p393, %s392, 3
        %s395 = smul.addr %s394, 2
        %s396 = smul.addr %s395, 8
        %s397 = scalar_lea.vmem %s4, %s396
        %s398 = smul.u32 2, %s27
        %s399 = smul.u32 2, %s27
        %s400 = smul.u32 2, %s27
        %p401 = scmp.lt.s32.totalorder %s400, 3
        %s402 = scalar_select %p401, %s400, 3
        %s403 = smul.addr %s402, 2
        %s404 = smul.addr %s403, 8
        %s405 = scalar_lea.vmem %s6, %s404
        %s406 = smul.u32 2, %s27
        %s407 = smul.u32 2, %s27
        %p408 = scmp.lt.s32.totalorder %s407, 3
        %s409 = scalar_select %p408, %s407, 3
        %s410 = smul.addr %s409, 2
        %s411 = smul.addr %s410, 8
        %s412 = scalar_lea.vmem %s7, %s411
        %s413 = smul.u32 2, %s27
        %p415 = scmp.eq.s32.totalorder %s28, 0
        // Predicated region
        $region45: #{tpu_custom_call.1} parent=39 // pred_check
          %p416 = pneg %p415
        $region46: #{tpu_custom_call.1} parent=39 // pred_check_branch
          %418 = sbr.rel (%p416) target = $region48
        $region47: #{tpu_custom_call.1} parent=39 // pred_region
          %vm419 = vcmask 7168
          %420 = vst.msk [vmem:[#allocation3] sm:$0xff] %vm419, -inf
          %421 = vst.msk [vmem:[#allocation3 + $0x8] sm:$0xff] %vm419, -inf
          %422 = vst.msk [vmem:[#allocation3 + $0x10] sm:$0xff] %vm419, -inf
          %423 = vst.msk [vmem:[#allocation3 + $0x18] sm:$0xff] %vm419, -inf
          %424 = vst.msk [vmem:[#allocation4] sm:$0xff] %vm419, 0.0
          %425 = vst.msk [vmem:[#allocation4 + $0x8] sm:$0xff] %vm419, 0.0
          %426 = vst.msk [vmem:[#allocation4 + $0x10] sm:$0xff] %vm419, 0.0
          %427 = vst.msk [vmem:[#allocation4 + $0x18] sm:$0xff] %vm419, 0.0
          %428 = vst.msk [vmem:[#allocation5] sm:$0xff] %vm419, -inf
          %429 = vst.msk [vmem:[#allocation5 + $0x8] sm:$0xff] %vm419, -inf
          %430 = vst.msk [vmem:[#allocation5 + $0x10] sm:$0xff] %vm419, -inf
          %431 = vst.msk [vmem:[#allocation5 + $0x18] sm:$0xff] %vm419, -inf
          %432 = vst.msk [vmem:[#allocation6] sm:$0xff] %vm419, 0
          %433 = vst.msk [vmem:[#allocation6 + $0x8] sm:$0xff] %vm419, 0
          %434 = vst.msk [vmem:[#allocation6 + $0x10] sm:$0xff] %vm419, 0
          %435 = vst.msk [vmem:[#allocation6 + $0x18] sm:$0xff] %vm419, 0
          %436 = vst.msk [vmem:[#allocation7] sm:$0xff] %vm419, 0.0
          %437 = vst.msk [vmem:[#allocation7 + $0x8] sm:$0xff] %vm419, 0.0
          %438 = vst.msk [vmem:[#allocation7 + $0x10] sm:$0xff] %vm419, 0.0
          %439 = vst.msk [vmem:[#allocation7 + $0x18] sm:$0xff] %vm419, 0.0
          %v440 = vld [vmem:[%s380] sm:$0xf]
          %v441 = vld [vmem:[%s380 + $0x4] sm:$0xf]
          %v442 = vld [vmem:[%s380 + $0x8] sm:$0xf]
          %v443 = vld [vmem:[%s380 + $0xc] sm:$0xf]
          %v444 = vld [vmem:[%s387] sm:$0xf]
          %v445 = vld [vmem:[%s387 + $0x4] sm:$0xf]
          %v446 = vld [vmem:[%s387 + $0x8] sm:$0xf]
          %v447 = vld [vmem:[%s387 + $0xc] sm:$0xf]
          %v450 = vunpack.c.l.b16 %v440
          %v451 = vunpack.c.l.b16 %v441
          %v452 = vpack.c.b16 %v451, %v450
          %v455 = vunpack.c.l.b16 %v444
          %v456 = vunpack.c.l.b16 %v445
          %v457 = vpack.c.b16 %v456, %v455
          %vm459 = vcmask 130048
          %v461 = vsel %vm459, %v452, 0
          %463 = vmatprep.subr.bf16.mxu0 0
          %464 = vmatpush1.bf16.msra.mxu0 0
          %465 = vmatprep.subr.bf16.mxu0 0
          %466 = vmatpush1.bf16.msra.mxu0 0
          %467 = vmatprep.subr.bf16.mxu0 0
          %468 = vmatpush1.bf16.msra.mxu0 0
          %469 = vmatprep.subr.bf16.mxu0 0
          %470 = vmatpush1.bf16.msra.mxu0 0
          %471 = vmatprep.subr.bf16.mxu0 0
          %472 = vmatpush1.bf16.msra.mxu0 0
          %473 = vmatprep.subr.bf16.mxu0 0
          %474 = vmatpush1.bf16.msra.mxu0 0
          %475 = vmatprep.subr.bf16.mxu0 0
          %476 = vmatpush1.bf16.msra.mxu0 0
          %477 = vmatprep.subr.bf16.mxu0 0
          %478 = vmatpush1.bf16.msra.mxu0 %v457
          %479 = vmatprep.subr.bf16.mxu0 0
          %480 = vmatpush2.bf16.msra.mxu0 0
          %481 = vmatprep.subr.bf16.mxu0 0
          %482 = vmatpush2.bf16.msra.mxu0 0
          %483 = vmatprep.subr.bf16.mxu0 0
          %484 = vmatpush2.bf16.msra.mxu0 0
          %485 = vmatprep.subr.bf16.mxu0 0
          %486 = vmatpush2.bf16.msra.mxu0 0
          %487 = vmatprep.subr.bf16.mxu0 0
          %488 = vmatpush2.bf16.msra.mxu0 0
          %489 = vmatprep.subr.bf16.mxu0 0
          %490 = vmatpush2.bf16.msra.mxu0 0
          %491 = vmatprep.subr.bf16.mxu0 0
          %492 = vmatpush2.bf16.msra.mxu0 0
          %493 = vmatprep.subr.bf16.mxu0 0
          %494 = vmatpush2.bf16.msra.mxu0 0
          %495 = vmatprep.mubr.bf16.mxu0 0
          %496 = vmatmul.mubr.bf16.gmra.mxu0 %v461
          %v497 = vpop.f32.mrf.mxu0
          %v498 = vadd.f32 0.0, %v497
          %v499 = vpop.f32.mrf.mxu0
          %v500 = vpop.f32.mrf.mxu0
          %v501 = vadd.f32 0.0, %v500
          %v502 = vpop.f32.mrf.mxu0
          %503 = vdwg.mxu0
          %v506 = vunpack.c.l.b16 %v442
          %v507 = vunpack.c.l.b16 %v443
          %v508 = vpack.c.b16 %v507, %v506
          %v511 = vunpack.c.l.b16 %v446
          %v512 = vunpack.c.l.b16 %v447
          %v513 = vpack.c.b16 %v512, %v511
          %v516 = vsel %vm459, %v508, 0
          %518 = vmatprep.subr.bf16.mxu0 0
          %519 = vmatpush1.bf16.msra.mxu0 0
          %520 = vmatprep.subr.bf16.mxu0 0
          %521 = vmatpush1.bf16.msra.mxu0 0
          %522 = vmatprep.subr.bf16.mxu0 0
          %523 = vmatpush1.bf16.msra.mxu0 0
          %524 = vmatprep.subr.bf16.mxu0 0
          %525 = vmatpush1.bf16.msra.mxu0 0
          %526 = vmatprep.subr.bf16.mxu0 0
          %527 = vmatpush1.bf16.msra.mxu0 0
          %528 = vmatprep.subr.bf16.mxu0 0
          %529 = vmatpush1.bf16.msra.mxu0 0
          %530 = vmatprep.subr.bf16.mxu0 0
          %531 = vmatpush1.bf16.msra.mxu0 0
          %532 = vmatprep.subr.bf16.mxu0 0
          %533 = vmatpush1.bf16.msra.mxu0 %v513
          %534 = vmatprep.subr.bf16.mxu0 0
          %535 = vmatpush2.bf16.msra.mxu0 0
          %536 = vmatprep.subr.bf16.mxu0 0
          %537 = vmatpush2.bf16.msra.mxu0 0
          %538 = vmatprep.subr.bf16.mxu0 0
          %539 = vmatpush2.bf16.msra.mxu0 0
          %540 = vmatprep.subr.bf16.mxu0 0
          %541 = vmatpush2.bf16.msra.mxu0 0
          %542 = vmatprep.subr.bf16.mxu0 0
          %543 = vmatpush2.bf16.msra.mxu0 0
          %544 = vmatprep.subr.bf16.mxu0 0
          %545 = vmatpush2.bf16.msra.mxu0 0
          %546 = vmatprep.subr.bf16.mxu0 0
          %547 = vmatpush2.bf16.msra.mxu0 0
          %548 = vmatprep.subr.bf16.mxu0 0
          %549 = vmatpush2.bf16.msra.mxu0 0
          %550 = vmatprep.mubr.bf16.mxu0 0
          %551 = vmatmul.mubr.bf16.gmra.mxu0 %v516
          %v552 = vpop.f32.mrf.mxu0
          %v553 = vadd.f32 0.0, %v552
          %v554 = vpop.f32.mrf.mxu0
          %v555 = vpop.f32.mrf.mxu0
          %v556 = vadd.f32 0.0, %v555
          %v557 = vpop.f32.mrf.mxu0
          %558 = vdwg.mxu0
          %v559 = vpack.c.bf16 %v501, %v498
          %v560 = vpack.c.bf16 %v556, %v553
          %v563 = vunpack.c.l.b16 %v559
          %v564 = vunpack.c.h.b16 %v559
          %v565 = vunpack.c.l.b16 %v560
          %v566 = vunpack.c.h.b16 %v560
          %v567 = vpack.c.b16 %v563, %v563
          %v568 = vpack.c.b16 %v564, %v564
          %v569 = vpack.c.b16 %v565, %v565
          %v570 = vpack.c.b16 %v566, %v566
          %vm575 = vcmask 257024
          %576 = vst.msk [vmem:[#allocation2] sm:$0xf] %vm575, %v567
          %577 = vst.msk [vmem:[#allocation2 + $0x4] sm:$0xf] %vm575, %v568
          %578 = vst.msk [vmem:[#allocation2 + $0x8] sm:$0xf] %vm575, %v569
          %579 = vst.msk [vmem:[#allocation2 + $0xc] sm:$0xf] %vm575, %v570
        $region48: #{tpu_custom_call.1} parent=39 // pred_fallthru
          _
        %v580 = vld [vmem:[#allocation8] sm:$0xf]
        %v581 = vld [vmem:[#allocation8 + $0x4] sm:$0xf]
        %v582 = vld [vmem:[#allocation8 + $0x8] sm:$0xf]
        %v583 = vld [vmem:[#allocation8 + $0xc] sm:$0xf]
        %v584 = vld [vmem:[%s391] sm:$0x1]
        %v585 = vld [vmem:[#allocation2] sm:$0xf]
        %v586 = vld [vmem:[#allocation2 + $0x4] sm:$0xf]
        %v587 = vld [vmem:[#allocation2 + $0x8] sm:$0xf]
        %v588 = vld [vmem:[#allocation2 + $0xc] sm:$0xf]
        %v593 = vunpack.c.l.b16 %v585
        %v594 = vunpack.c.l.b16 %v586
        %v595 = vunpack.c.l.b16 %v587
        %v596 = vunpack.c.l.b16 %v588
        %v597 = vpack.c.b16 %v594, %v593
        %v598 = vpack.c.b16 %v596, %v595
        %v603 = vunpack.c.l.b16 %v580
        %v604 = vunpack.c.l.b16 %v581
        %v605 = vunpack.c.l.b16 %v582
        %v606 = vunpack.c.l.b16 %v583
        %v607 = vpack.c.b16 %v604, %v603
        %v608 = vpack.c.b16 %v606, %v605
        %vm611 = vcmask 261120
        %v613 = vsel %vm611, %v597, 0
        %v616 = vsel %vm611, %v598, 0
        %618 = vmatprep.subr.bf16.mxu0 0
        %619 = vmatpush1.bf16.msra.mxu0 0
        %620 = vmatprep.subr.bf16.mxu0 0
        %621 = vmatpush1.bf16.msra.mxu0 0
        %622 = vmatprep.subr.bf16.mxu0 0
        %623 = vmatpush1.bf16.msra.mxu0 0
        %624 = vmatprep.subr.bf16.mxu0 0
        %625 = vmatpush1.bf16.msra.mxu0 0
        %626 = vmatprep.subr.bf16.mxu0 0
        %627 = vmatpush1.bf16.msra.mxu0 0
        %628 = vmatprep.subr.bf16.mxu0 0
        %629 = vmatpush1.bf16.msra.mxu0 0
        %630 = vmatprep.subr.bf16.mxu0 0
        %631 = vmatpush1.bf16.msra.mxu0 %v608
        %632 = vmatprep.subr.bf16.mxu0 0
        %633 = vmatpush1.bf16.msra.mxu0 %v607
        %634 = vmatprep.subr.bf16.mxu0 0
        %635 = vmatpush2.bf16.msra.mxu0 0
        %636 = vmatprep.subr.bf16.mxu0 0
        %637 = vmatpush2.bf16.msra.mxu0 0
        %638 = vmatprep.subr.bf16.mxu0 0
        %639 = vmatpush2.bf16.msra.mxu0 0
        %640 = vmatprep.subr.bf16.mxu0 0
        %641 = vmatpush2.bf16.msra.mxu0 0
        %642 = vmatprep.subr.bf16.mxu0 0
        %643 = vmatpush2.bf16.msra.mxu0 0
        %644 = vmatprep.subr.bf16.mxu0 0
        %645 = vmatpush2.bf16.msra.mxu0 0
        %646 = vmatprep.subr.bf16.mxu0 0
        %647 = vmatpush2.bf16.msra.mxu0 0
        %648 = vmatprep.subr.bf16.mxu0 0
        %649 = vmatpush2.bf16.msra.mxu0 0
        %650 = vmatprep.mubr.bf16.mxu0 0
        %651 = vmatmul.mubr.bf16.gmra.mxu0 %v613
        %v652 = vpop.f32.mrf.mxu0
        %v653 = vadd.f32 0.0, %v652
        %v654 = vpop.f32.mrf.mxu0
        %v655 = vpop.f32.mrf.mxu0
        %v656 = vadd.f32 0.0, %v655
        %v657 = vpop.f32.mrf.mxu0
        %658 = vmatprep.mubr.bf16.mxu0 0
        %659 = vmatmul.mubr.bf16.gmra.mxu0 %v616
        %v660 = vpop.f32.mrf.mxu0
        %v661 = vadd.f32 0.0, %v660
        %v662 = vpop.f32.mrf.mxu0
        %v663 = vpop.f32.mrf.mxu0
        %v664 = vadd.f32 0.0, %v663
        %v665 = vpop.f32.mrf.mxu0
        %666 = vdwg.mxu0
        %v668 = vlaneseq
        %v669 = vshrl.u32 %v668, 7
        %v670 = vsub.s32 0, %v669
        %v671 = vrot.slane %v584, %v670
        %v673 = vadd.f32 %v653, %v671
        %v674 = vadd.f32 %v656, %v671
        %v675 = vadd.f32 %v661, %v671
        %v676 = vadd.f32 %v664, %v671
        %v677 = vpack.c.bf16 %v674, %v673
        %v678 = vpack.c.bf16 %v676, %v675
        %v681 = vunpack.c.l.b16 %v677
        %v682 = vunpack.c.h.b16 %v677
        %v683 = vunpack.c.l.b16 %v678
        %v684 = vunpack.c.h.b16 %v678
        %v685 = vpack.c.b16 %v681, %v681
        %v686 = vpack.c.b16 %v682, %v682
        %v687 = vpack.c.b16 %v683, %v683
        %v688 = vpack.c.b16 %v684, %v684
        %693 = vst [vmem:[%s358] sm:$0xf] %v685
        %694 = vst [vmem:[%s358 + $0x4] sm:$0xf] %v686
        %695 = vst [vmem:[%s358 + $0x8] sm:$0xf] %v687
        %696 = vst [vmem:[%s358 + $0xc] sm:$0xf] %v688
        %v697 = vunpack.c.l.bf16 %v677
        %v698 = vunpack.c.h.bf16 %v677
        %v699 = vunpack.c.l.bf16 %v678
        %v700 = vunpack.c.h.bf16 %v678
        %v701 = vlaneseq
        %v702 = vand.u32 %v701, 127
        %703 = vmax.xlane.f32.xlu0 %v697
        %v704 = vpop.xlane.xlu0 %703
        %705 = vmax.xlane.f32.xlu0 %v698
        %v706 = vpop.xlane.xlu0 %705
        %707 = vmax.xlane.f32.xlu0 %v699
        %v708 = vpop.xlane.xlu0 %707
        %709 = vmax.xlane.f32.xlu0 %v700
        %v710 = vpop.xlane.xlu0 %709
        %vm711 = vcmp.eq.f32.partialorder %v697, %v704
        %vm712 = vcmp.eq.f32.partialorder %v698, %v706
        %vm713 = vcmp.eq.f32.partialorder %v699, %v708
        %vm714 = vcmp.eq.f32.partialorder %v700, %v710
        %v715 = vsel %vm711, %v702, 128
        %v716 = vsel %vm712, %v702, 128
        %v717 = vsel %vm713, %v702, 128
        %v718 = vsel %vm714, %v702, 128
        %v719 = vand.u32 %v715, 65535
        %v720 = vshra.s32 %v715, 16
        %v721 = vcvt.s32.f32 %v719
        %v722 = vcvt.s32.f32 %v720
        %723 = vmin.xlane.f32.xlu0 %v722
        %v724 = vpop.xlane.xlu0 %723
        %vm725 = vcmp.eq.f32.partialorder %v722, %v724
        %v726 = vsel %vm725, %v721, inf
        %727 = vmin.xlane.f32.xlu0 %v726
        %v728 = vpop.xlane.xlu0 %727
        %v729 = vcvt.f32.s32 %v728
        %v730 = vcvt.f32.s32 %v724
        %v731 = vshll.u32 %v730, 16
        %v732 = vadd.s32 %v731, %v729
        %v733 = vand.u32 %v716, 65535
        %v734 = vshra.s32 %v716, 16
        %v735 = vcvt.s32.f32 %v733
        %v736 = vcvt.s32.f32 %v734
        %737 = vmin.xlane.f32.xlu0 %v736
        %v738 = vpop.xlane.xlu0 %737
        %vm739 = vcmp.eq.f32.partialorder %v736, %v738
        %v740 = vsel %vm739, %v735, inf
        %741 = vmin.xlane.f32.xlu0 %v740
        %v742 = vpop.xlane.xlu0 %741
        %v743 = vcvt.f32.s32 %v742
        %v744 = vcvt.f32.s32 %v738
        %v745 = vshll.u32 %v744, 16
        %v746 = vadd.s32 %v745, %v743
        %v747 = vand.u32 %v717, 65535
        %v748 = vshra.s32 %v717, 16
        %v749 = vcvt.s32.f32 %v747
        %v750 = vcvt.s32.f32 %v748
        %751 = vmin.xlane.f32.xlu0 %v750
        %v752 = vpop.xlane.xlu0 %751
        %vm753 = vcmp.eq.f32.partialorder %v750, %v752
        %v754 = vsel %vm753, %v749, inf
        %755 = vmin.xlane.f32.xlu0 %v754
        %v756 = vpop.xlane.xlu0 %755
        %v757 = vcvt.f32.s32 %v756
        %v758 = vcvt.f32.s32 %v752
        %v759 = vshll.u32 %v758, 16
        %v760 = vadd.s32 %v759, %v757
        %v761 = vand.u32 %v718, 65535
        %v762 = vshra.s32 %v718, 16
        %v763 = vcvt.s32.f32 %v761
        %v764 = vcvt.s32.f32 %v762
        %765 = vmin.xlane.f32.xlu0 %v764
        %v766 = vpop.xlane.xlu0 %765
        %vm767 = vcmp.eq.f32.partialorder %v764, %v766
        %v768 = vsel %vm767, %v763, inf
        %769 = vmin.xlane.f32.xlu0 %v768
        %v770 = vpop.xlane.xlu0 %769
        %v771 = vcvt.f32.s32 %v770
        %v772 = vcvt.f32.s32 %v766
        %v773 = vshll.u32 %v772, 16
        %v774 = vadd.s32 %v773, %v771
        %s775 = smul.u32 %s28, 128
        %v776 = vstv %s775
        %v777 = vadd.s32 %v732, %v776
        %v778 = vadd.s32 %v746, %v776
        %v779 = vadd.s32 %v760, %v776
        %v780 = vadd.s32 %v774, %v776
        %v781 = vld [vmem:[#allocation5] sm:$0xff]
        %v782 = vld [vmem:[#allocation5 + $0x8] sm:$0xff]
        %v783 = vld [vmem:[#allocation5 + $0x10] sm:$0xff]
        %v784 = vld [vmem:[#allocation5 + $0x18] sm:$0xff]
        %vm785 = vcmp.gt.f32.partialorder %v704, %v781
        %vm786 = vcmp.gt.f32.partialorder %v706, %v782
        %vm787 = vcmp.gt.f32.partialorder %v708, %v783
        %vm788 = vcmp.gt.f32.partialorder %v710, %v784
        %v789 = vld [vmem:[#allocation6] sm:$0xff]
        %v790 = vld [vmem:[#allocation6 + $0x8] sm:$0xff]
        %v791 = vld [vmem:[#allocation6 + $0x10] sm:$0xff]
        %v792 = vld [vmem:[#allocation6 + $0x18] sm:$0xff]
        %v793 = vsel %vm785, %v777, %v789
        %v794 = vsel %vm786, %v778, %v790
        %v795 = vsel %vm787, %v779, %v791
        %v796 = vsel %vm788, %v780, %v792
        %vm797 = vcmask 7168
        %798 = vst.msk [vmem:[#allocation6] sm:$0xff] %vm797, %v793
        %799 = vst.msk [vmem:[#allocation6 + $0x8] sm:$0xff] %vm797, %v794
        %800 = vst.msk [vmem:[#allocation6 + $0x10] sm:$0xff] %vm797, %v795
        %801 = vst.msk [vmem:[#allocation6 + $0x18] sm:$0xff] %vm797, %v796
        %v802 = vld [vmem:[#allocation5] sm:$0xff]
        %v803 = vld [vmem:[#allocation5 + $0x8] sm:$0xff]
        %v804 = vld [vmem:[#allocation5 + $0x10] sm:$0xff]
        %v805 = vld [vmem:[#allocation5 + $0x18] sm:$0xff]
        %v806 = vsel %vm785, %v704, %v802
        %v807 = vsel %vm786, %v706, %v803
        %v808 = vsel %vm787, %v708, %v804
        %v809 = vsel %vm788, %v710, %v805
        %810 = vst.msk [vmem:[#allocation5] sm:$0xff] %vm797, %v806
        %811 = vst.msk [vmem:[#allocation5 + $0x8] sm:$0xff] %vm797, %v807
        %812 = vst.msk [vmem:[#allocation5 + $0x10] sm:$0xff] %vm797, %v808
        %813 = vst.msk [vmem:[#allocation5 + $0x18] sm:$0xff] %vm797, %v809
        %v814 = vld [vmem:[#allocation3] sm:$0xff]
        %v815 = vld [vmem:[#allocation3 + $0x8] sm:$0xff]
        %v816 = vld [vmem:[#allocation3 + $0x10] sm:$0xff]
        %v817 = vld [vmem:[#allocation3 + $0x18] sm:$0xff]
        %818 = vmax.xlane.f32.xlu0 %v673
        %v819 = vpop.xlane.xlu0 %818
        %820 = vmax.xlane.f32.xlu0 %v674
        %v821 = vpop.xlane.xlu0 %820
        %822 = vmax.xlane.f32.xlu0 %v675
        %v823 = vpop.xlane.xlu0 %822
        %824 = vmax.xlane.f32.xlu0 %v676
        %v825 = vpop.xlane.xlu0 %824
        %v826 = vmax.f32 %v814, %v819
        %v827 = vmax.f32 %v815, %v821
        %v828 = vmax.f32 %v816, %v823
        %v829 = vmax.f32 %v817, %v825
        %831 = vset.pattern.permute.xlu0 0
        %832 = vperm.xlu0 %831, %v826
        %v833 = vpop.permute.xlu0 %832
        %836 = vset.pattern.permute.xlu0 0
        %837 = vperm.xlu0 %836, %v827
        %v838 = vpop.permute.xlu0 %837
        %841 = vset.pattern.permute.xlu0 0
        %842 = vperm.xlu0 %841, %v828
        %v843 = vpop.permute.xlu0 %842
        %846 = vset.pattern.permute.xlu0 0
        %847 = vperm.xlu0 %846, %v829
        %v848 = vpop.permute.xlu0 %847
        %v850 = vsub.f32 %v673, %v833
        %v851 = vsub.f32 %v674, %v838
        %v852 = vsub.f32 %v675, %v843
        %v853 = vsub.f32 %v676, %v848
        %v854 = vmul.f32 %v850, 1.442695
        %v855 = vpow.pop %v854
        %v856 = vmul.f32 %v851, 1.442695
        %v857 = vpow.pop %v856
        %v858 = vmul.f32 %v852, 1.442695
        %v859 = vpow.pop %v858
        %v860 = vmul.f32 %v853, 1.442695
        %v861 = vpow.pop %v860
        %v862 = vld [vmem:[#allocation4] sm:$0xff]
        %v863 = vld [vmem:[#allocation4 + $0x8] sm:$0xff]
        %v864 = vld [vmem:[#allocation4 + $0x10] sm:$0xff]
        %v865 = vld [vmem:[#allocation4 + $0x18] sm:$0xff]
        %v866 = vsub.f32 %v814, %v826
        %v867 = vsub.f32 %v815, %v827
        %v868 = vsub.f32 %v816, %v828
        %v869 = vsub.f32 %v817, %v829
        %v870 = vmul.f32 %v866, 1.442695
        %v871 = vpow.pop %v870
        %v872 = vmul.f32 %v867, 1.442695
        %v873 = vpow.pop %v872
        %v874 = vmul.f32 %v868, 1.442695
        %v875 = vpow.pop %v874
        %v876 = vmul.f32 %v869, 1.442695
        %v877 = vpow.pop %v876
        %v878 = vmul.f32 %v862, %v871
        %v879 = vmul.f32 %v863, %v873
        %v880 = vmul.f32 %v864, %v875
        %v881 = vmul.f32 %v865, %v877
        %882 = vadd.xlane.f32.xlu0 %v855
        %v883 = vpop.xlane.xlu0 %882
        %884 = vadd.xlane.f32.xlu0 %v857
        %v885 = vpop.xlane.xlu0 %884
        %886 = vadd.xlane.f32.xlu0 %v859
        %v887 = vpop.xlane.xlu0 %886
        %888 = vadd.xlane.f32.xlu0 %v861
        %v889 = vpop.xlane.xlu0 %888
        %v890 = vadd.f32 %v878, %v883
        %v891 = vadd.f32 %v879, %v885
        %v892 = vadd.f32 %v880, %v887
        %v893 = vadd.f32 %v881, %v889
        %894 = vst.msk [vmem:[#allocation4] sm:$0xff] %vm797, %v890
        %895 = vst.msk [vmem:[#allocation4 + $0x8] sm:$0xff] %vm797, %v891
        %896 = vst.msk [vmem:[#allocation4 + $0x10] sm:$0xff] %vm797, %v892
        %897 = vst.msk [vmem:[#allocation4 + $0x18] sm:$0xff] %vm797, %v893
        %898 = vst.msk [vmem:[#allocation3] sm:$0xff] %vm797, %v826
        %899 = vst.msk [vmem:[#allocation3 + $0x8] sm:$0xff] %vm797, %v827
        %900 = vst.msk [vmem:[#allocation3 + $0x10] sm:$0xff] %vm797, %v828
        %901 = vst.msk [vmem:[#allocation3 + $0x18] sm:$0xff] %vm797, %v829
        %v902 = vld [vmem:[%s397] sm:$0xff]
        %v903 = vld [vmem:[%s397 + $0x8] sm:$0xff]
        %v904 = vld [vmem:[%s397 + $0x10] sm:$0xff]
        %v905 = vld [vmem:[%s397 + $0x18] sm:$0xff]
        %v906 = vadd.s32 %v702, %v776
        %v907 = vld [vmem:[#allocation7] sm:$0xff]
        %v908 = vld [vmem:[#allocation7 + $0x8] sm:$0xff]
        %v909 = vld [vmem:[#allocation7 + $0x10] sm:$0xff]
        %v910 = vld [vmem:[#allocation7 + $0x18] sm:$0xff]
        %911 = vset.pattern.permute.xlu0 0
        %912 = vperm.xlu0 %911, %v902
        %v913 = vpop.permute.xlu0 %912
        %914 = vset.pattern.permute.xlu0 0
        %915 = vperm.xlu0 %914, %v903
        %v916 = vpop.permute.xlu0 %915
        %917 = vset.pattern.permute.xlu0 0
        %918 = vperm.xlu0 %917, %v904
        %v919 = vpop.permute.xlu0 %918
        %920 = vset.pattern.permute.xlu0 0
        %921 = vperm.xlu0 %920, %v905
        %v922 = vpop.permute.xlu0 %921
        %vm923 = vcmp.eq.s32.totalorder %v906, %v913
        %vm924 = vcmp.eq.s32.totalorder %v906, %v916
        %vm925 = vcmp.eq.s32.totalorder %v906, %v919
        %vm926 = vcmp.eq.s32.totalorder %v906, %v922
        %v927 = vsel %vm923, %v673, 0.0
        %v928 = vsel %vm924, %v674, 0.0
        %v929 = vsel %vm925, %v675, 0.0
        %v930 = vsel %vm926, %v676, 0.0
        %931 = vadd.xlane.f32.xlu0 %v927
        %v932 = vpop.xlane.xlu0 %931
        %933 = vadd.xlane.f32.xlu0 %v928
        %v934 = vpop.xlane.xlu0 %933
        %935 = vadd.xlane.f32.xlu0 %v929
        %v936 = vpop.xlane.xlu0 %935
        %937 = vadd.xlane.f32.xlu0 %v930
        %v938 = vpop.xlane.xlu0 %937
        %v939 = vadd.f32 %v907, %v932
        %v940 = vadd.f32 %v908, %v934
        %v941 = vadd.f32 %v909, %v936
        %v942 = vadd.f32 %v910, %v938
        %943 = vst.msk [vmem:[#allocation7] sm:$0xff] %vm797, %v939
        %944 = vst.msk [vmem:[#allocation7 + $0x8] sm:$0xff] %vm797, %v940
        %945 = vst.msk [vmem:[#allocation7 + $0x10] sm:$0xff] %vm797, %v941
        %946 = vst.msk [vmem:[#allocation7 + $0x18] sm:$0xff] %vm797, %v942
        // Predicated region
        $region49: #{tpu_custom_call.1} parent=39 // pred_check
          %p947 = pneg %p415
        $region50: #{tpu_custom_call.1} parent=39 // pred_check_branch
          %949 = sbr.rel (%p947) target = $region52
        $region51: #{tpu_custom_call.1} parent=39 // pred_region
          %v950 = vld [vmem:[%s397] sm:$0xff]
          %v951 = vld [vmem:[%s397 + $0x8] sm:$0xff]
          %v952 = vld [vmem:[%s397 + $0x10] sm:$0xff]
          %v953 = vld [vmem:[%s397 + $0x18] sm:$0xff]
          %vm954 = vcmp.ne.s32.totalorder %v950, 0
          %vm955 = vcmp.ne.s32.totalorder %v951, 0
          %vm956 = vcmp.ne.s32.totalorder %v952, 0
          %vm957 = vcmp.ne.s32.totalorder %v953, 0
          %v958 = vsel %vm954, 1, 0
          %v959 = vsel %vm955, 1, 0
          %v960 = vsel %vm956, 1, 0
          %v961 = vsel %vm957, 1, 0
          %v962 = vcvt.s32.f32 %v958
          %v963 = vcvt.s32.f32 %v959
          %v964 = vcvt.s32.f32 %v960
          %v965 = vcvt.s32.f32 %v961
          %v966 = vld [vmem:[#allocation3] sm:$0xff]
          %v967 = vld [vmem:[#allocation3 + $0x8] sm:$0xff]
          %v968 = vld [vmem:[#allocation3 + $0x10] sm:$0xff]
          %v969 = vld [vmem:[#allocation3 + $0x18] sm:$0xff]
          %v970 = vld [vmem:[#allocation4] sm:$0xff]
          %v971 = vld [vmem:[#allocation4 + $0x8] sm:$0xff]
          %v972 = vld [vmem:[#allocation4 + $0x10] sm:$0xff]
          %v973 = vld [vmem:[#allocation4 + $0x18] sm:$0xff]
          %v974 = vlog2.pop %v970
          %v975 = vmul.f32 %v974, 0.6931472
          %v976 = vlog2.pop %v971
          %v977 = vmul.f32 %v976, 0.6931472
          %v978 = vlog2.pop %v972
          %v979 = vmul.f32 %v978, 0.6931472
          %v980 = vlog2.pop %v973
          %v981 = vmul.f32 %v980, 0.6931472
          %v982 = vadd.f32 %v966, %v975
          %v983 = vadd.f32 %v967, %v977
          %v984 = vadd.f32 %v968, %v979
          %v985 = vadd.f32 %v969, %v981
          %v986 = vld [vmem:[#allocation7] sm:$0xff]
          %v987 = vld [vmem:[#allocation7 + $0x8] sm:$0xff]
          %v988 = vld [vmem:[#allocation7 + $0x10] sm:$0xff]
          %v989 = vld [vmem:[#allocation7 + $0x18] sm:$0xff]
          %v990 = vsub.f32 %v982, %v986
          %v991 = vsub.f32 %v983, %v987
          %v992 = vsub.f32 %v984, %v988
          %v993 = vsub.f32 %v985, %v989
          %v994 = vmul.f32 %v990, %v962
          %v995 = vmul.f32 %v991, %v963
          %v996 = vmul.f32 %v992, %v964
          %v997 = vmul.f32 %v993, %v965
          %998 = vst.msk [vmem:[%s412] sm:$0xff] %vm797, %v994
          %999 = vst.msk [vmem:[%s412 + $0x8] sm:$0xff] %vm797, %v995
          %1000 = vst.msk [vmem:[%s412 + $0x10] sm:$0xff] %vm797, %v996
          %1001 = vst.msk [vmem:[%s412 + $0x18] sm:$0xff] %vm797, %v997
          %v1002 = vld [vmem:[#allocation6] sm:$0xff]
          %v1003 = vld [vmem:[#allocation6 + $0x8] sm:$0xff]
          %v1004 = vld [vmem:[#allocation6 + $0x10] sm:$0xff]
          %v1005 = vld [vmem:[#allocation6 + $0x18] sm:$0xff]
          %1006 = vst.msk [vmem:[%s405] sm:$0xff] %vm797, %v1002
          %1007 = vst.msk [vmem:[%s405 + $0x8] sm:$0xff] %vm797, %v1003
          %1008 = vst.msk [vmem:[%s405 + $0x10] sm:$0xff] %vm797, %v1004
          %1009 = vst.msk [vmem:[%s405 + $0x18] sm:$0xff] %vm797, %v1005
        $region52: #{tpu_custom_call.1} parent=39 // pred_fallthru
          _
        %s1010 = sand.u32 %s175, 1
        %s1011 = scalar_lea.sflag [#allocation10], %s1010
        %s1012 = sand.u32 %s175, 1
        %s1013 = smul.addr %s1012, 16
        %s1014 = scalar_lea.vmem [#allocation11], %s1013
        %s1015 = smul.u32 2, %s27
        %p1016 = scmp.lt.s32.totalorder %s1015, 3
        %s1017 = scalar_select %p1016, %s1015, 3
        %s1018 = smul.addr %s1017, 2
        %s1019 = smul.addr %s1018, 8
        %s1020 = scalar_lea.vmem %s6, %s1019
        %s1021 = smul.u32 2, %s27
        %p1022 = scmp.lt.s32.totalorder %s1021, 3
        %s1023 = scalar_select %p1022, %s1021, 3
        %s1024 = smul.addr %s1023, 2
        %s1025 = smul.addr %s1024, 8
        %s1026 = scalar_lea.vmem %s7, %s1025
        // Predicated region
        $region53: #{tpu_custom_call.1} parent=39 // pred_check
          %p1027 = pneg %p185
        $region54: #{tpu_custom_call.1} parent=39 // pred_check_branch
          %1029 = sbr.rel (%p1027) target = $region56
        $region55: #{tpu_custom_call.1} parent=39 // pred_region
          %s1030 = smul.u32 2, %s27
          %s1032 = ssub.s32 256, 256
          %1033 = vsyncadd %s1011, %s1032
          %s1034 = smul.addr %s1030, 2
          %s1035 = sadd.s32 %s28, %s1034
          %s1036 = smul.addr %s1035, 64
          %s1037 = scalar_lea.hbm %s5, %s1036
          %s1038 = sshll.u32 %s1014, 4
          %s1039 = int_to_ptr.vmem [resolvable:$true] %s1038
          %1044 = dma.vmem_to_hbm [thread:$0]  %s1039, 256, %s1037, %s1011, 64, 64, 4
        $region56: #{tpu_custom_call.1} parent=39 // pred_fallthru
          _
        // Predicated region
        $region57: #{tpu_custom_call.1} parent=39 // pred_check
          %p1045 = pneg %p211
        $region58: #{tpu_custom_call.1} parent=39 // pred_check_branch
          %1047 = sbr.rel (%p1045) target = $region60
        $region59: #{tpu_custom_call.1} parent=39 // pred_region
          %s1048 = smul.u32 2, %s27
        $region60: #{tpu_custom_call.1} parent=39 // pred_fallthru
          _
        // Predicated region
        $region61: #{tpu_custom_call.1} parent=39 // pred_check
          %p1049 = pneg %p237
        $region62: #{tpu_custom_call.1} parent=39 // pred_check_branch
          %1051 = sbr.rel (%p1049) target = $region64
        $region63: #{tpu_custom_call.1} parent=39 // pred_region
          %s1052 = smul.u32 2, %s27
        $region64: #{tpu_custom_call.1} parent=39 // pred_fallthru
          _
      $region40: #{tpu_custom_call.1} parent=5 // pred_fallthru
        _
      %p1053 = scmp.le.s32.totalorder 2, %s18
      // Predicated region
      $region65: #{tpu_custom_call.1} parent=5 // pred_check
        %p1054 = pneg %p1053
      $region66: #{tpu_custom_call.1} parent=5 // pred_check_branch
        %1056 = sbr.rel (%p1054) target = $region68
      $region67: #{tpu_custom_call.1} parent=5 // pred_region
        %s1057 = ssub.s32 %s18, 2
        // Predicated region
        $region69: #{tpu_custom_call.1} parent=67 // pred_check
          %p1058 = pneg %p191
        $region70: #{tpu_custom_call.1} parent=67 // pred_check_branch
          %1060 = sbr.rel (%p1058) target = $region72
        $region71: #{tpu_custom_call.1} parent=67 // pred_region
          %s1061 = sand.u32 %s176, 1
          %s1062 = scalar_lea.sflag [#allocation10], %s1061
          %s1063 = sand.u32 %s176, 1
          %s1064 = smul.addr %s1063, 16
          %s1065 = scalar_lea.vmem [#allocation11], %s1064
          %1066 = dma.done %s1062, 256
        $region72: #{tpu_custom_call.1} parent=67 // pred_fallthru
          _
        // Predicated region
        $region73: #{tpu_custom_call.1} parent=67 // pred_check
          %p1067 = pneg %p217
        $region74: #{tpu_custom_call.1} parent=67 // pred_check_branch
          %1069 = sbr.rel (%p1067) target = $region76
        $region75: #{tpu_custom_call.1} parent=67 // pred_region
          %s1070 = smul.u32 2, %s29
          %p1071 = scmp.lt.s32.totalorder %s1070, 3
          %s1072 = scalar_select %p1071, %s1070, 3
          %s1073 = smul.addr %s1072, 2
          %s1074 = smul.addr %s1073, 8
          %s1075 = scalar_lea.vmem %s6, %s1074
        $region76: #{tpu_custom_call.1} parent=67 // pred_fallthru
          _
        // Predicated region
        $region77: #{tpu_custom_call.1} parent=67 // pred_check
          %p1076 = pneg %p243
        $region78: #{tpu_custom_call.1} parent=67 // pred_check_branch
          %1078 = sbr.rel (%p1076) target = $region80
        $region79: #{tpu_custom_call.1} parent=67 // pred_region
          %s1079 = smul.u32 2, %s29
          %p1080 = scmp.lt.s32.totalorder %s1079, 3
          %s1081 = scalar_select %p1080, %s1079, 3
          %s1082 = smul.addr %s1081, 2
          %s1083 = smul.addr %s1082, 8
          %s1084 = scalar_lea.vmem %s7, %s1083
        $region80: #{tpu_custom_call.1} parent=67 // pred_fallthru
          _
      $region68: #{tpu_custom_call.1} parent=5 // pred_fallthru
        _
    $region6: #{tpu_custom_call.1} parent=1 // loop_footer
      %s22 = sadd.s32 1, %s18
    $region7: #{tpu_custom_call.1} parent=1 // loop_footer_branch
      %17 = sbr.rel target = $region3
    $region8: #{tpu_custom_call.1} parent=1 // loop_exit
      _
    %1085 = vsyncpa [#allocation9], 1
    %s1086 = scalar_lea.sflag [#allocation9], 1
    %1087 = vsyncpa %s1086, 1
    %1088 = vsyncpa [#allocation10], 1
    %s1089 = scalar_lea.sflag [#allocation10], 1
    %1090 = vsyncpa %s1089, 1

</llo_original>
